<compile_context>
chip_gen: v5e
topology: v5e:2x2
jax: 0.10.0
libtpu: 0.0.40
codegen_flags: <defaults>
</compile_context>

<pallas_src>
import jax
import jax.numpy as jnp
from jax.experimental import pallas as pl
from jax.experimental.pallas import tpu as pltpu

EPS = 1e-5


def _bn_prelu(y, gb, a):
    # y: (B, F) f32 pre-activation; gb: (2, F) = [gamma; beta]; a: PReLU slope.
    mean = jnp.mean(y, axis=0, keepdims=True)
    yc = y - mean                                   # computed once, reused
    var = jnp.mean(yc * yc, axis=0, keepdims=True)  # biased var (BN training mode)
    scale = gb[0:1, :] * jax.lax.rsqrt(var + EPS)   # fold gamma into the scale
    z = yc * scale + gb[1:2, :]                     # single FMA per element
    return jnp.where(z >= 0, z, a * z)              # PReLU (shared slope)


def _block(x, w_ref, gb_ref, a):
    # Linear (bias omitted: it cancels exactly under training-mode BN) -> BN -> PReLU.
    y = jnp.dot(x.astype(jnp.bfloat16), w_ref[...],
                preferred_element_type=jnp.float32)
    return _bn_prelu(y, gb_ref[...], a)


def mlp_batchnorm_kernel(scal_ref, ge_ref, d_ref,
                         gw1, gg1, gw2, gg2, gw3, gg3,
                         dw1, dg1, dw2, dg2, dw3, dg3,
                         cw1g, cw1d, cg1, cw2, cg2, cw3, cg3,
                         w4_ref, out_ref):
    # scal_ref (SMEM, f32[10]): [0:9] PReLU slopes per layer, [9] final bias.
    ge = ge_ref[...]
    d = d_ref[...]

    # geMLP: 3 x (Linear -> BatchNorm1d -> PReLU)
    ge = _block(ge, gw1, gg1, scal_ref[0])
    ge = _block(ge, gw2, gg2, scal_ref[1])
    ge = _block(ge, gw3, gg3, scal_ref[2])

    # dMLP: 3 x (Linear -> BatchNorm1d -> PReLU)
    d = _block(d, dw1, dg1, scal_ref[3])
    d = _block(d, dw2, dg2, scal_ref[4])
    d = _block(d, dw3, dg3, scal_ref[5])

    # combineLayer1 applied to torch.cat([ge, d], dim=1) without a lane-axis
    # concat: split the (128, 128) weight into two (64, 128) halves and sum
    # the two MXU results in the f32 accumulator.
    y = (jnp.dot(ge.astype(jnp.bfloat16), cw1g[...],
                 preferred_element_type=jnp.float32)
         + jnp.dot(d.astype(jnp.bfloat16), cw1d[...],
                   preferred_element_type=jnp.float32))
    comb = _bn_prelu(y, cg1[...], scal_ref[6])
    comb = _block(comb, cw2, cg2, scal_ref[7])
    comb = _block(comb, cw3, cg3, scal_ref[8])

    # Final Linear(64 -> 1): VPU multiply + lane reduce (avoids an N=1 MXU pass).
    out_ref[...] = jnp.sum(comb * w4_ref[...], axis=1, keepdims=True) + scal_ref[9]


def _w(key, fan_in, fan_out):
    # PyTorch Linear default weight init: U(-1/sqrt(fan_in), 1/sqrt(fan_in)),
    # stored pre-transposed (in, out) and cast to bf16 for the MXU.
    bound = 1.0 / float(fan_in) ** 0.5
    return jax.random.uniform(key, (fan_in, fan_out), jnp.float32,
                              -bound, bound).astype(jnp.bfloat16)


def _gb(fan_out):
    # Packed [gamma; beta] for BatchNorm1d at init (gamma=1, beta=0).
    return jnp.stack([jnp.ones((fan_out,), jnp.float32),
                      jnp.zeros((fan_out,), jnp.float32)], axis=0)


def init_params(key):
    keys = jax.random.split(key, 10)
    tensors = []
    # geMLP: 256 -> 256 -> 256 -> 64
    tensors += [_w(keys[0], 256, 256), _gb(256)]
    tensors += [_w(keys[1], 256, 256), _gb(256)]
    tensors += [_w(keys[2], 256, 64), _gb(64)]
    # dMLP: 56 -> 128 -> 128 -> 64
    tensors += [_w(keys[3], 56, 128), _gb(128)]
    tensors += [_w(keys[4], 128, 128), _gb(128)]
    tensors += [_w(keys[5], 128, 64), _gb(64)]
    # combineMLP: 128 -> 128 -> 128 -> 64 -> 1
    # First weight split into ge/d halves (torch.cat order is [ge, d]).
    cw1 = _w(keys[6], 128, 128)
    tensors += [cw1[:64, :], cw1[64:, :], _gb(128)]
    tensors += [_w(keys[7], 128, 128), _gb(128)]
    tensors += [_w(keys[8], 128, 64), _gb(64)]
    # Final Linear(64, 1): f32 row vector for the VPU reduce path.
    k1, k2 = jax.random.split(keys[9])
    bound = 1.0 / float(64) ** 0.5
    w4 = jax.random.uniform(k1, (1, 64), jnp.float32, -bound, bound)
    b4 = jax.random.uniform(k2, (), jnp.float32, -bound, bound)
    tensors += [w4]
    # Packed SMEM scalars: 9 PReLU slopes (PyTorch init 0.25) + final bias.
    scalars = jnp.concatenate(
        [jnp.full((9,), 0.25, jnp.float32), b4.reshape(1)], axis=0)
    return scalars, tuple(tensors)


def mlp_batchnorm_forward(ge_latent, d_latent, params):
    scalars, tensors = params
    batch = ge_latent.shape[0]
    args = [scalars, ge_latent, d_latent] + list(tensors)
    in_specs = ([pl.BlockSpec(memory_space=pltpu.MemorySpace.SMEM)]
                + [pl.BlockSpec(memory_space=pltpu.MemorySpace.VMEM)]
                * (len(args) - 1))
    return pl.pallas_call(
        mlp_batchnorm_kernel,
        out_shape=jax.ShapeDtypeStruct((batch, 1), jnp.float32),
        in_specs=in_specs,
        out_specs=pl.BlockSpec(memory_space=pltpu.MemorySpace.VMEM),
    )(*args)


if __name__ == "__main__":
    key = jax.random.PRNGKey(0)
    k_ge, k_d, k_params = jax.random.split(key, 3)

    batch = 8
    ge_latent = jax.random.normal(k_ge, (batch, 256), jnp.float32)
    d_latent = jax.random.normal(k_d, (batch, 56), jnp.float32)
    params = init_params(k_params)

    out = mlp_batchnorm_forward(ge_latent, d_latent, params)
    out = jax.block_until_ready(out)
    assert out.shape == (batch, 1) and out.dtype == jnp.float32
    print("KERNEL_OK")
</pallas_src>

<mosaic_0001>
module attributes {stable_mosaic.version = 11 : i64} {
  func.func @mlp_batchnorm_kernel(%arg0: memref<10xf32, #tpu.memory_space<smem>>, %arg1: memref<8x256xf32, #tpu.memory_space<vmem>>, %arg2: memref<8x56xf32, #tpu.memory_space<vmem>>, %arg3: memref<256x256xbf16, #tpu.memory_space<vmem>>, %arg4: memref<2x256xf32, #tpu.memory_space<vmem>>, %arg5: memref<256x256xbf16, #tpu.memory_space<vmem>>, %arg6: memref<2x256xf32, #tpu.memory_space<vmem>>, %arg7: memref<256x64xbf16, #tpu.memory_space<vmem>>, %arg8: memref<2x64xf32, #tpu.memory_space<vmem>>, %arg9: memref<56x128xbf16, #tpu.memory_space<vmem>>, %arg10: memref<2x128xf32, #tpu.memory_space<vmem>>, %arg11: memref<128x128xbf16, #tpu.memory_space<vmem>>, %arg12: memref<2x128xf32, #tpu.memory_space<vmem>>, %arg13: memref<128x64xbf16, #tpu.memory_space<vmem>>, %arg14: memref<2x64xf32, #tpu.memory_space<vmem>>, %arg15: memref<64x128xbf16, #tpu.memory_space<vmem>>, %arg16: memref<64x128xbf16, #tpu.memory_space<vmem>>, %arg17: memref<2x128xf32, #tpu.memory_space<vmem>>, %arg18: memref<128x128xbf16, #tpu.memory_space<vmem>>, %arg19: memref<2x128xf32, #tpu.memory_space<vmem>>, %arg20: memref<128x64xbf16, #tpu.memory_space<vmem>>, %arg21: memref<2x64xf32, #tpu.memory_space<vmem>>, %arg22: memref<1x64xf32, #tpu.memory_space<vmem>>, %arg23: memref<8x1xf32, #tpu.memory_space<vmem>>) attributes {dimension_semantics = [], scalar_prefetch = 0 : i64, scratch_operands = 0 : i64, tpu.core_type = #tpu.core_type<tc>} {
    %c0 = arith.constant 0 : index
    %c0_0 = arith.constant 0 : index
    %0 = vector.load %arg1[%c0, %c0_0] : memref<8x256xf32, #tpu.memory_space<vmem>>, vector<8x256xf32>
    %c0_1 = arith.constant 0 : index
    %c0_2 = arith.constant 0 : index
    %1 = vector.load %arg2[%c0_1, %c0_2] : memref<8x56xf32, #tpu.memory_space<vmem>>, vector<8x56xf32>
    %c0_3 = arith.constant 0 : index
    %2 = memref.load %arg0[%c0_3] : memref<10xf32, #tpu.memory_space<smem>>
    %3 = arith.truncf %0 : vector<8x256xf32> to vector<8x256xbf16>
    %c0_4 = arith.constant 0 : index
    %c0_5 = arith.constant 0 : index
    %4 = vector.load %arg3[%c0_4, %c0_5] : memref<256x256xbf16, #tpu.memory_space<vmem>>, vector<256x256xbf16>
    %cst = arith.constant dense<0.000000e+00> : vector<8x256xf32>
    %5 = tpu.matmul %3, %4, %cst {dimension_numbers = #tpu.dot_dimension_numbers<[1], [0], [0], [1], [0, 0, 1, 1], [], []>} : vector<8x256xbf16>, vector<256x256xbf16>, vector<8x256xf32> -> vector<8x256xf32>
    %c0_6 = arith.constant 0 : index
    %c0_7 = arith.constant 0 : index
    %6 = vector.load %arg4[%c0_6, %c0_7] : memref<2x256xf32, #tpu.memory_space<vmem>>, vector<2x256xf32>
    %cst_8 = arith.constant dense<0.000000e+00> : vector<256xf32>
    %7 = vector.multi_reduction <add>, %5, %cst_8 [0] : vector<8x256xf32> to vector<256xf32>
    %8 = vector.shape_cast %7 : vector<256xf32> to vector<1x256xf32>
    %cst_9 = arith.constant 8.000000e+00 : f32
    %9 = vector.broadcast %cst_9 : f32 to vector<1x256xf32>
    %10 = arith.divf %8, %9 : vector<1x256xf32>
    %11 = vector.broadcast %10 : vector<1x256xf32> to vector<8x256xf32>
    %12 = arith.subf %5, %11 : vector<8x256xf32>
    %13 = arith.mulf %12, %12 : vector<8x256xf32>
    %cst_10 = arith.constant dense<0.000000e+00> : vector<256xf32>
    %14 = vector.multi_reduction <add>, %13, %cst_10 [0] : vector<8x256xf32> to vector<256xf32>
    %15 = vector.shape_cast %14 : vector<256xf32> to vector<1x256xf32>
    %cst_11 = arith.constant 8.000000e+00 : f32
    %16 = vector.broadcast %cst_11 : f32 to vector<1x256xf32>
    %17 = arith.divf %15, %16 : vector<1x256xf32>
    %18 = vector.extract_strided_slice %6 {offsets = [0, 0], sizes = [1, 256], strides = [1, 1]} : vector<2x256xf32> to vector<1x256xf32>
    %cst_12 = arith.constant 9.99999974E-6 : f32
    %19 = vector.broadcast %cst_12 : f32 to vector<1x256xf32>
    %20 = arith.addf %17, %19 : vector<1x256xf32>
    %21 = math.rsqrt %20 : vector<1x256xf32>
    %22 = arith.mulf %18, %21 : vector<1x256xf32>
    %23 = vector.broadcast %22 : vector<1x256xf32> to vector<8x256xf32>
    %24 = arith.mulf %12, %23 : vector<8x256xf32>
    %25 = vector.extract_strided_slice %6 {offsets = [1, 0], sizes = [1, 256], strides = [1, 1]} : vector<2x256xf32> to vector<1x256xf32>
    %26 = vector.broadcast %25 : vector<1x256xf32> to vector<8x256xf32>
    %27 = arith.addf %24, %26 : vector<8x256xf32>
    %cst_13 = arith.constant 0.000000e+00 : f32
    %28 = vector.broadcast %cst_13 : f32 to vector<8x256xf32>
    %29 = arith.cmpf oge, %27, %28 : vector<8x256xf32>
    %30 = vector.broadcast %2 : f32 to vector<8x256xf32>
    %31 = arith.mulf %30, %27 : vector<8x256xf32>
    %32 = arith.select %29, %27, %31 : vector<8x256xi1>, vector<8x256xf32>
    %c1 = arith.constant 1 : index
    %33 = memref.load %arg0[%c1] : memref<10xf32, #tpu.memory_space<smem>>
    %34 = arith.truncf %32 : vector<8x256xf32> to vector<8x256xbf16>
    %c0_14 = arith.constant 0 : index
    %c0_15 = arith.constant 0 : index
    %35 = vector.load %arg5[%c0_14, %c0_15] : memref<256x256xbf16, #tpu.memory_space<vmem>>, vector<256x256xbf16>
    %cst_16 = arith.constant dense<0.000000e+00> : vector<8x256xf32>
    %36 = tpu.matmul %34, %35, %cst_16 {dimension_numbers = #tpu.dot_dimension_numbers<[1], [0], [0], [1], [0, 0, 1, 1], [], []>} : vector<8x256xbf16>, vector<256x256xbf16>, vector<8x256xf32> -> vector<8x256xf32>
    %c0_17 = arith.constant 0 : index
    %c0_18 = arith.constant 0 : index
    %37 = vector.load %arg6[%c0_17, %c0_18] : memref<2x256xf32, #tpu.memory_space<vmem>>, vector<2x256xf32>
    %cst_19 = arith.constant dense<0.000000e+00> : vector<256xf32>
    %38 = vector.multi_reduction <add>, %36, %cst_19 [0] : vector<8x256xf32> to vector<256xf32>
    %39 = vector.shape_cast %38 : vector<256xf32> to vector<1x256xf32>
    %cst_20 = arith.constant 8.000000e+00 : f32
    %40 = vector.broadcast %cst_20 : f32 to vector<1x256xf32>
    %41 = arith.divf %39, %40 : vector<1x256xf32>
    %42 = vector.broadcast %41 : vector<1x256xf32> to vector<8x256xf32>
    %43 = arith.subf %36, %42 : vector<8x256xf32>
    %44 = arith.mulf %43, %43 : vector<8x256xf32>
    %cst_21 = arith.constant dense<0.000000e+00> : vector<256xf32>
    %45 = vector.multi_reduction <add>, %44, %cst_21 [0] : vector<8x256xf32> to vector<256xf32>
    %46 = vector.shape_cast %45 : vector<256xf32> to vector<1x256xf32>
    %cst_22 = arith.constant 8.000000e+00 : f32
    %47 = vector.broadcast %cst_22 : f32 to vector<1x256xf32>
    %48 = arith.divf %46, %47 : vector<1x256xf32>
    %49 = vector.extract_strided_slice %37 {offsets = [0, 0], sizes = [1, 256], strides = [1, 1]} : vector<2x256xf32> to vector<1x256xf32>
    %cst_23 = arith.constant 9.99999974E-6 : f32
    %50 = vector.broadcast %cst_23 : f32 to vector<1x256xf32>
    %51 = arith.addf %48, %50 : vector<1x256xf32>
    %52 = math.rsqrt %51 : vector<1x256xf32>
    %53 = arith.mulf %49, %52 : vector<1x256xf32>
    %54 = vector.broadcast %53 : vector<1x256xf32> to vector<8x256xf32>
    %55 = arith.mulf %43, %54 : vector<8x256xf32>
    %56 = vector.extract_strided_slice %37 {offsets = [1, 0], sizes = [1, 256], strides = [1, 1]} : vector<2x256xf32> to vector<1x256xf32>
    %57 = vector.broadcast %56 : vector<1x256xf32> to vector<8x256xf32>
    %58 = arith.addf %55, %57 : vector<8x256xf32>
    %cst_24 = arith.constant 0.000000e+00 : f32
    %59 = vector.broadcast %cst_24 : f32 to vector<8x256xf32>
    %60 = arith.cmpf oge, %58, %59 : vector<8x256xf32>
    %61 = vector.broadcast %33 : f32 to vector<8x256xf32>
    %62 = arith.mulf %61, %58 : vector<8x256xf32>
    %63 = arith.select %60, %58, %62 : vector<8x256xi1>, vector<8x256xf32>
    %c2 = arith.constant 2 : index
    %64 = memref.load %arg0[%c2] : memref<10xf32, #tpu.memory_space<smem>>
    %65 = arith.truncf %63 : vector<8x256xf32> to vector<8x256xbf16>
    %c0_25 = arith.constant 0 : index
    %c0_26 = arith.constant 0 : index
    %66 = vector.load %arg7[%c0_25, %c0_26] : memref<256x64xbf16, #tpu.memory_space<vmem>>, vector<256x64xbf16>
    %cst_27 = arith.constant dense<0.000000e+00> : vector<8x64xf32>
    %67 = tpu.matmul %65, %66, %cst_27 {dimension_numbers = #tpu.dot_dimension_numbers<[1], [0], [0], [1], [0, 0, 1, 1], [], []>} : vector<8x256xbf16>, vector<256x64xbf16>, vector<8x64xf32> -> vector<8x64xf32>
    %c0_28 = arith.constant 0 : index
    %c0_29 = arith.constant 0 : index
    %68 = vector.load %arg8[%c0_28, %c0_29] : memref<2x64xf32, #tpu.memory_space<vmem>>, vector<2x64xf32>
    %cst_30 = arith.constant dense<0.000000e+00> : vector<64xf32>
    %69 = vector.multi_reduction <add>, %67, %cst_30 [0] : vector<8x64xf32> to vector<64xf32>
    %70 = vector.shape_cast %69 : vector<64xf32> to vector<1x64xf32>
    %cst_31 = arith.constant 8.000000e+00 : f32
    %71 = vector.broadcast %cst_31 : f32 to vector<1x64xf32>
    %72 = arith.divf %70, %71 : vector<1x64xf32>
    %73 = vector.broadcast %72 : vector<1x64xf32> to vector<8x64xf32>
    %74 = arith.subf %67, %73 : vector<8x64xf32>
    %75 = arith.mulf %74, %74 : vector<8x64xf32>
    %cst_32 = arith.constant dense<0.000000e+00> : vector<64xf32>
    %76 = vector.multi_reduction <add>, %75, %cst_32 [0] : vector<8x64xf32> to vector<64xf32>
    %77 = vector.shape_cast %76 : vector<64xf32> to vector<1x64xf32>
    %cst_33 = arith.constant 8.000000e+00 : f32
    %78 = vector.broadcast %cst_33 : f32 to vector<1x64xf32>
    %79 = arith.divf %77, %78 : vector<1x64xf32>
    %80 = vector.extract_strided_slice %68 {offsets = [0, 0], sizes = [1, 64], strides = [1, 1]} : vector<2x64xf32> to vector<1x64xf32>
    %cst_34 = arith.constant 9.99999974E-6 : f32
    %81 = vector.broadcast %cst_34 : f32 to vector<1x64xf32>
    %82 = arith.addf %79, %81 : vector<1x64xf32>
    %83 = math.rsqrt %82 : vector<1x64xf32>
    %84 = arith.mulf %80, %83 : vector<1x64xf32>
    %85 = vector.broadcast %84 : vector<1x64xf32> to vector<8x64xf32>
    %86 = arith.mulf %74, %85 : vector<8x64xf32>
    %87 = vector.extract_strided_slice %68 {offsets = [1, 0], sizes = [1, 64], strides = [1, 1]} : vector<2x64xf32> to vector<1x64xf32>
    %88 = vector.broadcast %87 : vector<1x64xf32> to vector<8x64xf32>
    %89 = arith.addf %86, %88 : vector<8x64xf32>
    %cst_35 = arith.constant 0.000000e+00 : f32
    %90 = vector.broadcast %cst_35 : f32 to vector<8x64xf32>
    %91 = arith.cmpf oge, %89, %90 : vector<8x64xf32>
    %92 = vector.broadcast %64 : f32 to vector<8x64xf32>
    %93 = arith.mulf %92, %89 : vector<8x64xf32>
    %94 = arith.select %91, %89, %93 : vector<8x64xi1>, vector<8x64xf32>
    %c3 = arith.constant 3 : index
    %95 = memref.load %arg0[%c3] : memref<10xf32, #tpu.memory_space<smem>>
    %96 = arith.truncf %1 : vector<8x56xf32> to vector<8x56xbf16>
    %c0_36 = arith.constant 0 : index
    %c0_37 = arith.constant 0 : index
    %97 = vector.load %arg9[%c0_36, %c0_37] : memref<56x128xbf16, #tpu.memory_space<vmem>>, vector<56x128xbf16>
    %cst_38 = arith.constant dense<0.000000e+00> : vector<8x128xf32>
    %98 = tpu.matmul %96, %97, %cst_38 {dimension_numbers = #tpu.dot_dimension_numbers<[1], [0], [0], [1], [0, 0, 1, 1], [], []>} : vector<8x56xbf16>, vector<56x128xbf16>, vector<8x128xf32> -> vector<8x128xf32>
    %c0_39 = arith.constant 0 : index
    %c0_40 = arith.constant 0 : index
    %99 = vector.load %arg10[%c0_39, %c0_40] : memref<2x128xf32, #tpu.memory_space<vmem>>, vector<2x128xf32>
    %cst_41 = arith.constant dense<0.000000e+00> : vector<128xf32>
    %100 = vector.multi_reduction <add>, %98, %cst_41 [0] : vector<8x128xf32> to vector<128xf32>
    %101 = vector.shape_cast %100 : vector<128xf32> to vector<1x128xf32>
    %cst_42 = arith.constant 8.000000e+00 : f32
    %102 = vector.broadcast %cst_42 : f32 to vector<1x128xf32>
    %103 = arith.divf %101, %102 : vector<1x128xf32>
    %104 = vector.broadcast %103 : vector<1x128xf32> to vector<8x128xf32>
    %105 = arith.subf %98, %104 : vector<8x128xf32>
    %106 = arith.mulf %105, %105 : vector<8x128xf32>
    %cst_43 = arith.constant dense<0.000000e+00> : vector<128xf32>
    %107 = vector.multi_reduction <add>, %106, %cst_43 [0] : vector<8x128xf32> to vector<128xf32>
    %108 = vector.shape_cast %107 : vector<128xf32> to vector<1x128xf32>
    %cst_44 = arith.constant 8.000000e+00 : f32
    %109 = vector.broadcast %cst_44 : f32 to vector<1x128xf32>
    %110 = arith.divf %108, %109 : vector<1x128xf32>
    %111 = vector.extract_strided_slice %99 {offsets = [0, 0], sizes = [1, 128], strides = [1, 1]} : vector<2x128xf32> to vector<1x128xf32>
    %cst_45 = arith.constant 9.99999974E-6 : f32
    %112 = vector.broadcast %cst_45 : f32 to vector<1x128xf32>
    %113 = arith.addf %110, %112 : vector<1x128xf32>
    %114 = math.rsqrt %113 : vector<1x128xf32>
    %115 = arith.mulf %111, %114 : vector<1x128xf32>
    %116 = vector.broadcast %115 : vector<1x128xf32> to vector<8x128xf32>
    %117 = arith.mulf %105, %116 : vector<8x128xf32>
    %118 = vector.extract_strided_slice %99 {offsets = [1, 0], sizes = [1, 128], strides = [1, 1]} : vector<2x128xf32> to vector<1x128xf32>
    %119 = vector.broadcast %118 : vector<1x128xf32> to vector<8x128xf32>
    %120 = arith.addf %117, %119 : vector<8x128xf32>
    %cst_46 = arith.constant 0.000000e+00 : f32
    %121 = vector.broadcast %cst_46 : f32 to vector<8x128xf32>
    %122 = arith.cmpf oge, %120, %121 : vector<8x128xf32>
    %123 = vector.broadcast %95 : f32 to vector<8x128xf32>
    %124 = arith.mulf %123, %120 : vector<8x128xf32>
    %125 = arith.select %122, %120, %124 : vector<8x128xi1>, vector<8x128xf32>
    %c4 = arith.constant 4 : index
    %126 = memref.load %arg0[%c4] : memref<10xf32, #tpu.memory_space<smem>>
    %127 = arith.truncf %125 : vector<8x128xf32> to vector<8x128xbf16>
    %c0_47 = arith.constant 0 : index
    %c0_48 = arith.constant 0 : index
    %128 = vector.load %arg11[%c0_47, %c0_48] : memref<128x128xbf16, #tpu.memory_space<vmem>>, vector<128x128xbf16>
    %cst_49 = arith.constant dense<0.000000e+00> : vector<8x128xf32>
    %129 = tpu.matmul %127, %128, %cst_49 {dimension_numbers = #tpu.dot_dimension_numbers<[1], [0], [0], [1], [0, 0, 1, 1], [], []>} : vector<8x128xbf16>, vector<128x128xbf16>, vector<8x128xf32> -> vector<8x128xf32>
    %c0_50 = arith.constant 0 : index
    %c0_51 = arith.constant 0 : index
    %130 = vector.load %arg12[%c0_50, %c0_51] : memref<2x128xf32, #tpu.memory_space<vmem>>, vector<2x128xf32>
    %cst_52 = arith.constant dense<0.000000e+00> : vector<128xf32>
    %131 = vector.multi_reduction <add>, %129, %cst_52 [0] : vector<8x128xf32> to vector<128xf32>
    %132 = vector.shape_cast %131 : vector<128xf32> to vector<1x128xf32>
    %cst_53 = arith.constant 8.000000e+00 : f32
    %133 = vector.broadcast %cst_53 : f32 to vector<1x128xf32>
    %134 = arith.divf %132, %133 : vector<1x128xf32>
    %135 = vector.broadcast %134 : vector<1x128xf32> to vector<8x128xf32>
    %136 = arith.subf %129, %135 : vector<8x128xf32>
    %137 = arith.mulf %136, %136 : vector<8x128xf32>
    %cst_54 = arith.constant dense<0.000000e+00> : vector<128xf32>
    %138 = vector.multi_reduction <add>, %137, %cst_54 [0] : vector<8x128xf32> to vector<128xf32>
    %139 = vector.shape_cast %138 : vector<128xf32> to vector<1x128xf32>
    %cst_55 = arith.constant 8.000000e+00 : f32
    %140 = vector.broadcast %cst_55 : f32 to vector<1x128xf32>
    %141 = arith.divf %139, %140 : vector<1x128xf32>
    %142 = vector.extract_strided_slice %130 {offsets = [0, 0], sizes = [1, 128], strides = [1, 1]} : vector<2x128xf32> to vector<1x128xf32>
    %cst_56 = arith.constant 9.99999974E-6 : f32
    %143 = vector.broadcast %cst_56 : f32 to vector<1x128xf32>
    %144 = arith.addf %141, %143 : vector<1x128xf32>
    %145 = math.rsqrt %144 : vector<1x128xf32>
    %146 = arith.mulf %142, %145 : vector<1x128xf32>
    %147 = vector.broadcast %146 : vector<1x128xf32> to vector<8x128xf32>
    %148 = arith.mulf %136, %147 : vector<8x128xf32>
    %149 = vector.extract_strided_slice %130 {offsets = [1, 0], sizes = [1, 128], strides = [1, 1]} : vector<2x128xf32> to vector<1x128xf32>
    %150 = vector.broadcast %149 : vector<1x128xf32> to vector<8x128xf32>
    %151 = arith.addf %148, %150 : vector<8x128xf32>
    %cst_57 = arith.constant 0.000000e+00 : f32
    %152 = vector.broadcast %cst_57 : f32 to vector<8x128xf32>
    %153 = arith.cmpf oge, %151, %152 : vector<8x128xf32>
    %154 = vector.broadcast %126 : f32 to vector<8x128xf32>
    %155 = arith.mulf %154, %151 : vector<8x128xf32>
    %156 = arith.select %153, %151, %155 : vector<8x128xi1>, vector<8x128xf32>
    %c5 = arith.constant 5 : index
    %157 = memref.load %arg0[%c5] : memref<10xf32, #tpu.memory_space<smem>>
    %158 = arith.truncf %156 : vector<8x128xf32> to vector<8x128xbf16>
    %c0_58 = arith.constant 0 : index
    %c0_59 = arith.constant 0 : index
    %159 = vector.load %arg13[%c0_58, %c0_59] : memref<128x64xbf16, #tpu.memory_space<vmem>>, vector<128x64xbf16>
    %cst_60 = arith.constant dense<0.000000e+00> : vector<8x64xf32>
    %160 = tpu.matmul %158, %159, %cst_60 {dimension_numbers = #tpu.dot_dimension_numbers<[1], [0], [0], [1], [0, 0, 1, 1], [], []>} : vector<8x128xbf16>, vector<128x64xbf16>, vector<8x64xf32> -> vector<8x64xf32>
    %c0_61 = arith.constant 0 : index
    %c0_62 = arith.constant 0 : index
    %161 = vector.load %arg14[%c0_61, %c0_62] : memref<2x64xf32, #tpu.memory_space<vmem>>, vector<2x64xf32>
    %cst_63 = arith.constant dense<0.000000e+00> : vector<64xf32>
    %162 = vector.multi_reduction <add>, %160, %cst_63 [0] : vector<8x64xf32> to vector<64xf32>
    %163 = vector.shape_cast %162 : vector<64xf32> to vector<1x64xf32>
    %cst_64 = arith.constant 8.000000e+00 : f32
    %164 = vector.broadcast %cst_64 : f32 to vector<1x64xf32>
    %165 = arith.divf %163, %164 : vector<1x64xf32>
    %166 = vector.broadcast %165 : vector<1x64xf32> to vector<8x64xf32>
    %167 = arith.subf %160, %166 : vector<8x64xf32>
    %168 = arith.mulf %167, %167 : vector<8x64xf32>
    %cst_65 = arith.constant dense<0.000000e+00> : vector<64xf32>
    %169 = vector.multi_reduction <add>, %168, %cst_65 [0] : vector<8x64xf32> to vector<64xf32>
    %170 = vector.shape_cast %169 : vector<64xf32> to vector<1x64xf32>
    %cst_66 = arith.constant 8.000000e+00 : f32
    %171 = vector.broadcast %cst_66 : f32 to vector<1x64xf32>
    %172 = arith.divf %170, %171 : vector<1x64xf32>
    %173 = vector.extract_strided_slice %161 {offsets = [0, 0], sizes = [1, 64], strides = [1, 1]} : vector<2x64xf32> to vector<1x64xf32>
    %cst_67 = arith.constant 9.99999974E-6 : f32
    %174 = vector.broadcast %cst_67 : f32 to vector<1x64xf32>
    %175 = arith.addf %172, %174 : vector<1x64xf32>
    %176 = math.rsqrt %175 : vector<1x64xf32>
    %177 = arith.mulf %173, %176 : vector<1x64xf32>
    %178 = vector.broadcast %177 : vector<1x64xf32> to vector<8x64xf32>
    %179 = arith.mulf %167, %178 : vector<8x64xf32>
    %180 = vector.extract_strided_slice %161 {offsets = [1, 0], sizes = [1, 64], strides = [1, 1]} : vector<2x64xf32> to vector<1x64xf32>
    %181 = vector.broadcast %180 : vector<1x64xf32> to vector<8x64xf32>
    %182 = arith.addf %179, %181 : vector<8x64xf32>
    %cst_68 = arith.constant 0.000000e+00 : f32
    %183 = vector.broadcast %cst_68 : f32 to vector<8x64xf32>
    %184 = arith.cmpf oge, %182, %183 : vector<8x64xf32>
    %185 = vector.broadcast %157 : f32 to vector<8x64xf32>
    %186 = arith.mulf %185, %182 : vector<8x64xf32>
    %187 = arith.select %184, %182, %186 : vector<8x64xi1>, vector<8x64xf32>
    %188 = arith.truncf %94 : vector<8x64xf32> to vector<8x64xbf16>
    %c0_69 = arith.constant 0 : index
    %c0_70 = arith.constant 0 : index
    %189 = vector.load %arg15[%c0_69, %c0_70] : memref<64x128xbf16, #tpu.memory_space<vmem>>, vector<64x128xbf16>
    %cst_71 = arith.constant dense<0.000000e+00> : vector<8x128xf32>
    %190 = tpu.matmul %188, %189, %cst_71 {dimension_numbers = #tpu.dot_dimension_numbers<[1], [0], [0], [1], [0, 0, 1, 1], [], []>} : vector<8x64xbf16>, vector<64x128xbf16>, vector<8x128xf32> -> vector<8x128xf32>
    %191 = arith.truncf %187 : vector<8x64xf32> to vector<8x64xbf16>
    %c0_72 = arith.constant 0 : index
    %c0_73 = arith.constant 0 : index
    %192 = vector.load %arg16[%c0_72, %c0_73] : memref<64x128xbf16, #tpu.memory_space<vmem>>, vector<64x128xbf16>
    %cst_74 = arith.constant dense<0.000000e+00> : vector<8x128xf32>
    %193 = tpu.matmul %191, %192, %cst_74 {dimension_numbers = #tpu.dot_dimension_numbers<[1], [0], [0], [1], [0, 0, 1, 1], [], []>} : vector<8x64xbf16>, vector<64x128xbf16>, vector<8x128xf32> -> vector<8x128xf32>
    %194 = arith.addf %190, %193 : vector<8x128xf32>
    %c0_75 = arith.constant 0 : index
    %c0_76 = arith.constant 0 : index
    %195 = vector.load %arg17[%c0_75, %c0_76] : memref<2x128xf32, #tpu.memory_space<vmem>>, vector<2x128xf32>
    %c6 = arith.constant 6 : index
    %196 = memref.load %arg0[%c6] : memref<10xf32, #tpu.memory_space<smem>>
    %cst_77 = arith.constant dense<0.000000e+00> : vector<128xf32>
    %197 = vector.multi_reduction <add>, %194, %cst_77 [0] : vector<8x128xf32> to vector<128xf32>
    %198 = vector.shape_cast %197 : vector<128xf32> to vector<1x128xf32>
    %cst_78 = arith.constant 8.000000e+00 : f32
    %199 = vector.broadcast %cst_78 : f32 to vector<1x128xf32>
    %200 = arith.divf %198, %199 : vector<1x128xf32>
    %201 = vector.broadcast %200 : vector<1x128xf32> to vector<8x128xf32>
    %202 = arith.subf %194, %201 : vector<8x128xf32>
    %203 = arith.mulf %202, %202 : vector<8x128xf32>
    %cst_79 = arith.constant dense<0.000000e+00> : vector<128xf32>
    %204 = vector.multi_reduction <add>, %203, %cst_79 [0] : vector<8x128xf32> to vector<128xf32>
    %205 = vector.shape_cast %204 : vector<128xf32> to vector<1x128xf32>
    %cst_80 = arith.constant 8.000000e+00 : f32
    %206 = vector.broadcast %cst_80 : f32 to vector<1x128xf32>
    %207 = arith.divf %205, %206 : vector<1x128xf32>
    %208 = vector.extract_strided_slice %195 {offsets = [0, 0], sizes = [1, 128], strides = [1, 1]} : vector<2x128xf32> to vector<1x128xf32>
    %cst_81 = arith.constant 9.99999974E-6 : f32
    %209 = vector.broadcast %cst_81 : f32 to vector<1x128xf32>
    %210 = arith.addf %207, %209 : vector<1x128xf32>
    %211 = math.rsqrt %210 : vector<1x128xf32>
    %212 = arith.mulf %208, %211 : vector<1x128xf32>
    %213 = vector.broadcast %212 : vector<1x128xf32> to vector<8x128xf32>
    %214 = arith.mulf %202, %213 : vector<8x128xf32>
    %215 = vector.extract_strided_slice %195 {offsets = [1, 0], sizes = [1, 128], strides = [1, 1]} : vector<2x128xf32> to vector<1x128xf32>
    %216 = vector.broadcast %215 : vector<1x128xf32> to vector<8x128xf32>
    %217 = arith.addf %214, %216 : vector<8x128xf32>
    %cst_82 = arith.constant 0.000000e+00 : f32
    %218 = vector.broadcast %cst_82 : f32 to vector<8x128xf32>
    %219 = arith.cmpf oge, %217, %218 : vector<8x128xf32>
    %220 = vector.broadcast %196 : f32 to vector<8x128xf32>
    %221 = arith.mulf %220, %217 : vector<8x128xf32>
    %222 = arith.select %219, %217, %221 : vector<8x128xi1>, vector<8x128xf32>
    %c7 = arith.constant 7 : index
    %223 = memref.load %arg0[%c7] : memref<10xf32, #tpu.memory_space<smem>>
    %224 = arith.truncf %222 : vector<8x128xf32> to vector<8x128xbf16>
    %c0_83 = arith.constant 0 : index
    %c0_84 = arith.constant 0 : index
    %225 = vector.load %arg18[%c0_83, %c0_84] : memref<128x128xbf16, #tpu.memory_space<vmem>>, vector<128x128xbf16>
    %cst_85 = arith.constant dense<0.000000e+00> : vector<8x128xf32>
    %226 = tpu.matmul %224, %225, %cst_85 {dimension_numbers = #tpu.dot_dimension_numbers<[1], [0], [0], [1], [0, 0, 1, 1], [], []>} : vector<8x128xbf16>, vector<128x128xbf16>, vector<8x128xf32> -> vector<8x128xf32>
    %c0_86 = arith.constant 0 : index
    %c0_87 = arith.constant 0 : index
    %227 = vector.load %arg19[%c0_86, %c0_87] : memref<2x128xf32, #tpu.memory_space<vmem>>, vector<2x128xf32>
    %cst_88 = arith.constant dense<0.000000e+00> : vector<128xf32>
    %228 = vector.multi_reduction <add>, %226, %cst_88 [0] : vector<8x128xf32> to vector<128xf32>
    %229 = vector.shape_cast %228 : vector<128xf32> to vector<1x128xf32>
    %cst_89 = arith.constant 8.000000e+00 : f32
    %230 = vector.broadcast %cst_89 : f32 to vector<1x128xf32>
    %231 = arith.divf %229, %230 : vector<1x128xf32>
    %232 = vector.broadcast %231 : vector<1x128xf32> to vector<8x128xf32>
    %233 = arith.subf %226, %232 : vector<8x128xf32>
    %234 = arith.mulf %233, %233 : vector<8x128xf32>
    %cst_90 = arith.constant dense<0.000000e+00> : vector<128xf32>
    %235 = vector.multi_reduction <add>, %234, %cst_90 [0] : vector<8x128xf32> to vector<128xf32>
    %236 = vector.shape_cast %235 : vector<128xf32> to vector<1x128xf32>
    %cst_91 = arith.constant 8.000000e+00 : f32
    %237 = vector.broadcast %cst_91 : f32 to vector<1x128xf32>
    %238 = arith.divf %236, %237 : vector<1x128xf32>
    %239 = vector.extract_strided_slice %227 {offsets = [0, 0], sizes = [1, 128], strides = [1, 1]} : vector<2x128xf32> to vector<1x128xf32>
    %cst_92 = arith.constant 9.99999974E-6 : f32
    %240 = vector.broadcast %cst_92 : f32 to vector<1x128xf32>
    %241 = arith.addf %238, %240 : vector<1x128xf32>
    %242 = math.rsqrt %241 : vector<1x128xf32>
    %243 = arith.mulf %239, %242 : vector<1x128xf32>
    %244 = vector.broadcast %243 : vector<1x128xf32> to vector<8x128xf32>
    %245 = arith.mulf %233, %244 : vector<8x128xf32>
    %246 = vector.extract_strided_slice %227 {offsets = [1, 0], sizes = [1, 128], strides = [1, 1]} : vector<2x128xf32> to vector<1x128xf32>
    %247 = vector.broadcast %246 : vector<1x128xf32> to vector<8x128xf32>
    %248 = arith.addf %245, %247 : vector<8x128xf32>
    %cst_93 = arith.constant 0.000000e+00 : f32
    %249 = vector.broadcast %cst_93 : f32 to vector<8x128xf32>
    %250 = arith.cmpf oge, %248, %249 : vector<8x128xf32>
    %251 = vector.broadcast %223 : f32 to vector<8x128xf32>
    %252 = arith.mulf %251, %248 : vector<8x128xf32>
    %253 = arith.select %250, %248, %252 : vector<8x128xi1>, vector<8x128xf32>
    %c8 = arith.constant 8 : index
    %254 = memref.load %arg0[%c8] : memref<10xf32, #tpu.memory_space<smem>>
    %255 = arith.truncf %253 : vector<8x128xf32> to vector<8x128xbf16>
    %c0_94 = arith.constant 0 : index
    %c0_95 = arith.constant 0 : index
    %256 = vector.load %arg20[%c0_94, %c0_95] : memref<128x64xbf16, #tpu.memory_space<vmem>>, vector<128x64xbf16>
    %cst_96 = arith.constant dense<0.000000e+00> : vector<8x64xf32>
    %257 = tpu.matmul %255, %256, %cst_96 {dimension_numbers = #tpu.dot_dimension_numbers<[1], [0], [0], [1], [0, 0, 1, 1], [], []>} : vector<8x128xbf16>, vector<128x64xbf16>, vector<8x64xf32> -> vector<8x64xf32>
    %c0_97 = arith.constant 0 : index
    %c0_98 = arith.constant 0 : index
    %258 = vector.load %arg21[%c0_97, %c0_98] : memref<2x64xf32, #tpu.memory_space<vmem>>, vector<2x64xf32>
    %cst_99 = arith.constant dense<0.000000e+00> : vector<64xf32>
    %259 = vector.multi_reduction <add>, %257, %cst_99 [0] : vector<8x64xf32> to vector<64xf32>
    %260 = vector.shape_cast %259 : vector<64xf32> to vector<1x64xf32>
    %cst_100 = arith.constant 8.000000e+00 : f32
    %261 = vector.broadcast %cst_100 : f32 to vector<1x64xf32>
    %262 = arith.divf %260, %261 : vector<1x64xf32>
    %263 = vector.broadcast %262 : vector<1x64xf32> to vector<8x64xf32>
    %264 = arith.subf %257, %263 : vector<8x64xf32>
    %265 = arith.mulf %264, %264 : vector<8x64xf32>
    %cst_101 = arith.constant dense<0.000000e+00> : vector<64xf32>
    %266 = vector.multi_reduction <add>, %265, %cst_101 [0] : vector<8x64xf32> to vector<64xf32>
    %267 = vector.shape_cast %266 : vector<64xf32> to vector<1x64xf32>
    %cst_102 = arith.constant 8.000000e+00 : f32
    %268 = vector.broadcast %cst_102 : f32 to vector<1x64xf32>
    %269 = arith.divf %267, %268 : vector<1x64xf32>
    %270 = vector.extract_strided_slice %258 {offsets = [0, 0], sizes = [1, 64], strides = [1, 1]} : vector<2x64xf32> to vector<1x64xf32>
    %cst_103 = arith.constant 9.99999974E-6 : f32
    %271 = vector.broadcast %cst_103 : f32 to vector<1x64xf32>
    %272 = arith.addf %269, %271 : vector<1x64xf32>
    %273 = math.rsqrt %272 : vector<1x64xf32>
    %274 = arith.mulf %270, %273 : vector<1x64xf32>
    %275 = vector.broadcast %274 : vector<1x64xf32> to vector<8x64xf32>
    %276 = arith.mulf %264, %275 : vector<8x64xf32>
    %277 = vector.extract_strided_slice %258 {offsets = [1, 0], sizes = [1, 64], strides = [1, 1]} : vector<2x64xf32> to vector<1x64xf32>
    %278 = vector.broadcast %277 : vector<1x64xf32> to vector<8x64xf32>
    %279 = arith.addf %276, %278 : vector<8x64xf32>
    %cst_104 = arith.constant 0.000000e+00 : f32
    %280 = vector.broadcast %cst_104 : f32 to vector<8x64xf32>
    %281 = arith.cmpf oge, %279, %280 : vector<8x64xf32>
    %282 = vector.broadcast %254 : f32 to vector<8x64xf32>
    %283 = arith.mulf %282, %279 : vector<8x64xf32>
    %284 = arith.select %281, %279, %283 : vector<8x64xi1>, vector<8x64xf32>
    %c0_105 = arith.constant 0 : index
    %c0_106 = arith.constant 0 : index
    %285 = vector.load %arg22[%c0_105, %c0_106] : memref<1x64xf32, #tpu.memory_space<vmem>>, vector<1x64xf32>
    %286 = vector.broadcast %285 : vector<1x64xf32> to vector<8x64xf32>
    %287 = arith.mulf %284, %286 : vector<8x64xf32>
    %cst_107 = arith.constant dense<0.000000e+00> : vector<8xf32>
    %288 = vector.multi_reduction <add>, %287, %cst_107 [1] : vector<8x64xf32> to vector<8xf32>
    %289 = vector.shape_cast %288 : vector<8xf32> to vector<8x1xf32>
    %c9 = arith.constant 9 : index
    %290 = memref.load %arg0[%c9] : memref<10xf32, #tpu.memory_space<smem>>
    %291 = vector.broadcast %290 : f32 to vector<8x1xf32>
    %292 = arith.addf %289, %291 : vector<8x1xf32>
    %c0_108 = arith.constant 0 : index
    %c0_109 = arith.constant 0 : index
    %293 = vector.load %arg23[%c0_108, %c0_109] : memref<8x1xf32, #tpu.memory_space<vmem>>, vector<8x1xf32>
    tpu.vector_store %arg23[%c0_108, %c0_109], %292 {strides = array<i32>} : memref<8x1xf32, #tpu.memory_space<vmem>>, vector<8x1xf32>,
    return
  }
}

</mosaic_0001>

<llo_original>
// kernel: tpu_custom_call.1
$region0: #{tpu_custom_call.1}
  #allocation0 [shape = 'u32[]', space=smem, size = 0x4, offset = 0x4, fixed_abs, tag = 'smem constant byte address 0x4 - core index']
  #allocation1 [shape = 'u32[72,128]{1,0:T(1,128)}', space=vmem, size = 0x9000, scoped, tag = 'internal scratch']
  %s0 = inlined_call_operand.vmem [shape: f32[10], index: 0, kind: input, shape index: {}]
  %s1 = inlined_call_operand.vmem [shape: f32[8,256], index: 1, kind: input, shape index: {}]
  %s2 = inlined_call_operand.vmem [shape: f32[8,56], index: 2, kind: input, shape index: {}]
  %s3 = inlined_call_operand.hbm [shape: bf16[256,256], index: 3, kind: input, shape index: {}]
  %s4 = inlined_call_operand.vmem [shape: f32[2,256], index: 4, kind: input, shape index: {}]
  %s5 = inlined_call_operand.hbm [shape: bf16[256,256], index: 5, kind: input, shape index: {}]
  %s6 = inlined_call_operand.vmem [shape: f32[2,256], index: 6, kind: input, shape index: {}]
  %s7 = inlined_call_operand.vmem [shape: bf16[256,64], index: 7, kind: input, shape index: {}]
  %s8 = inlined_call_operand.vmem [shape: f32[2,64], index: 8, kind: input, shape index: {}]
  %s9 = inlined_call_operand.vmem [shape: bf16[56,128], index: 9, kind: input, shape index: {}]
  %s10 = inlined_call_operand.vmem [shape: f32[2,128], index: 10, kind: input, shape index: {}]
  %s11 = inlined_call_operand.vmem [shape: bf16[128,128], index: 11, kind: input, shape index: {}]
  %s12 = inlined_call_operand.vmem [shape: f32[2,128], index: 12, kind: input, shape index: {}]
  %s13 = inlined_call_operand.vmem [shape: bf16[128,64], index: 13, kind: input, shape index: {}]
  %s14 = inlined_call_operand.vmem [shape: f32[2,64], index: 14, kind: input, shape index: {}]
  %s15 = inlined_call_operand.vmem [shape: bf16[64,128], index: 15, kind: input, shape index: {}]
  %s16 = inlined_call_operand.vmem [shape: bf16[64,128], index: 16, kind: input, shape index: {}]
  %s17 = inlined_call_operand.vmem [shape: f32[2,128], index: 17, kind: input, shape index: {}]
  %s18 = inlined_call_operand.vmem [shape: bf16[128,128], index: 18, kind: input, shape index: {}]
  %s19 = inlined_call_operand.vmem [shape: f32[2,128], index: 19, kind: input, shape index: {}]
  %s20 = inlined_call_operand.vmem [shape: bf16[128,64], index: 20, kind: input, shape index: {}]
  %s21 = inlined_call_operand.vmem [shape: f32[2,64], index: 21, kind: input, shape index: {}]
  %s22 = inlined_call_operand.vmem [shape: f32[1,64], index: 22, kind: input, shape index: {}]
  %s23 = inlined_call_operand.vmem [shape: f32[8,1], index: 23, kind: output, shape index: {}]
  %s24 = sld [smem:[#allocation0]]
  $region114: #{tpu_custom_call.1} parent=0
    _
  %s26 = ssub.s32 1, %s24
  %s27 = scalar_select 0, %s26, %s24
  $region1: #{tpu_custom_call.1} parent=0
    #allocation2 [shape = 'u8[512]{0}', space=smem, size = 0x200, scoped, tag = 'input window, operand 0, single buffered']
    #allocation3 [shape = 's32[1]{0}', space=sflag, size = 0x4, scoped, tag = 'scoped memory for tpu_custom_call.1']
    #allocation4 [shape = 's32[1]{0}', space=sflag, size = 0x4, scoped, tag = 'scoped memory for tpu_custom_call.1']
    #allocation5 [shape = 'u8[131072]{0}', space=vmem, size = 0x20000, scoped, tag = 'input window, operand 3, single buffered']
    #allocation6 [shape = 'u8[131072]{0}', space=vmem, size = 0x20000, scoped, tag = 'input window, operand 5, single buffered']
    #allocation7 [shape = 's32[1]{0}', space=sflag, size = 0x4, scoped, tag = 'scoped memory for tpu_custom_call.1']
    %28 = vsyncpa [#allocation4], 0
    %29 = vsyncpa [#allocation3], 0
    %30 = vsyncpa [#allocation7], 0
    // Predicated region
    $region2: #{tpu_custom_call.1} parent=1 // pred_check
      _
    $region3: #{tpu_custom_call.1} parent=1 // pred_check_branch
      %32 = sbr.rel (0) target = $region5
    $region4: #{tpu_custom_call.1} parent=1 // pred_region
      %34 = vsyncadd [#allocation4], 0
      %s36 = sshll.u32 %s0, 4
      %s37 = int_to_ptr.vmem [resolvable:$true] %s36
      %39 = dma.vmem_to_smem %s37, 16, [#allocation2], [#allocation4]
    $region5: #{tpu_custom_call.1} parent=1 // pred_fallthru
      _
    // Predicated region
    $region6: #{tpu_custom_call.1} parent=1 // pred_check
      _
    $region7: #{tpu_custom_call.1} parent=1 // pred_check_branch
      %41 = sbr.rel (0) target = $region9
    $region8: #{tpu_custom_call.1} parent=1 // pred_region
      _
    $region9: #{tpu_custom_call.1} parent=1 // pred_fallthru
      _
    // Predicated region
    $region10: #{tpu_custom_call.1} parent=1 // pred_check
      _
    $region11: #{tpu_custom_call.1} parent=1 // pred_check_branch
      %43 = sbr.rel (0) target = $region13
    $region12: #{tpu_custom_call.1} parent=1 // pred_region
      _
    $region13: #{tpu_custom_call.1} parent=1 // pred_fallthru
      _
    // Predicated region
    $region14: #{tpu_custom_call.1} parent=1 // pred_check
      _
    $region15: #{tpu_custom_call.1} parent=1 // pred_check_branch
      %45 = sbr.rel (0) target = $region17
    $region16: #{tpu_custom_call.1} parent=1 // pred_region
      %47 = vsyncadd [#allocation3], 0
      %s48 = sshll.u32 %s3, 4
      %s49 = int_to_ptr.hbm [resolvable:$true] %s48
      %s50 = sshll.u32 [#allocation5], 4
      %s51 = int_to_ptr.vmem [resolvable:$true] %s50
      %56 = dma.hbm_to_vmem [thread:$0]  %s49, 4096, %s51, [#allocation3], 128, 128, 8
    $region17: #{tpu_custom_call.1} parent=1 // pred_fallthru
      _
    // Predicated region
    $region18: #{tpu_custom_call.1} parent=1 // pred_check
      _
    $region19: #{tpu_custom_call.1} parent=1 // pred_check_branch
      %58 = sbr.rel (0) target = $region21
    $region20: #{tpu_custom_call.1} parent=1 // pred_region
      _
    $region21: #{tpu_custom_call.1} parent=1 // pred_fallthru
      _
    // Predicated region
    $region22: #{tpu_custom_call.1} parent=1 // pred_check
      _
    $region23: #{tpu_custom_call.1} parent=1 // pred_check_branch
      %60 = sbr.rel (0) target = $region25
    $region24: #{tpu_custom_call.1} parent=1 // pred_region
      %62 = vsyncadd [#allocation7], 0
      %s63 = sshll.u32 %s5, 4
      %s64 = int_to_ptr.hbm [resolvable:$true] %s63
      %s65 = sshll.u32 [#allocation6], 4
      %s66 = int_to_ptr.vmem [resolvable:$true] %s65
      %71 = dma.hbm_to_vmem [thread:$0]  %s64, 4096, %s66, [#allocation7], 128, 128, 8
    $region25: #{tpu_custom_call.1} parent=1 // pred_fallthru
      _
    // Predicated region
    $region26: #{tpu_custom_call.1} parent=1 // pred_check
      _
    $region27: #{tpu_custom_call.1} parent=1 // pred_check_branch
      %73 = sbr.rel (0) target = $region29
    $region28: #{tpu_custom_call.1} parent=1 // pred_region
      _
    $region29: #{tpu_custom_call.1} parent=1 // pred_fallthru
      _
    // Predicated region
    $region30: #{tpu_custom_call.1} parent=1 // pred_check
      _
    $region31: #{tpu_custom_call.1} parent=1 // pred_check_branch
      %75 = sbr.rel (0) target = $region33
    $region32: #{tpu_custom_call.1} parent=1 // pred_region
      _
    $region33: #{tpu_custom_call.1} parent=1 // pred_fallthru
      _
    // Predicated region
    $region34: #{tpu_custom_call.1} parent=1 // pred_check
      _
    $region35: #{tpu_custom_call.1} parent=1 // pred_check_branch
      %77 = sbr.rel (0) target = $region37
    $region36: #{tpu_custom_call.1} parent=1 // pred_region
      _
    $region37: #{tpu_custom_call.1} parent=1 // pred_fallthru
      _
    // Predicated region
    $region38: #{tpu_custom_call.1} parent=1 // pred_check
      _
    $region39: #{tpu_custom_call.1} parent=1 // pred_check_branch
      %79 = sbr.rel (0) target = $region41
    $region40: #{tpu_custom_call.1} parent=1 // pred_region
      _
    $region41: #{tpu_custom_call.1} parent=1 // pred_fallthru
      _
    // Predicated region
    $region42: #{tpu_custom_call.1} parent=1 // pred_check
      _
    $region43: #{tpu_custom_call.1} parent=1 // pred_check_branch
      %81 = sbr.rel (0) target = $region45
    $region44: #{tpu_custom_call.1} parent=1 // pred_region
      _
    $region45: #{tpu_custom_call.1} parent=1 // pred_fallthru
      _
    // Predicated region
    $region46: #{tpu_custom_call.1} parent=1 // pred_check
      _
    $region47: #{tpu_custom_call.1} parent=1 // pred_check_branch
      %83 = sbr.rel (0) target = $region49
    $region48: #{tpu_custom_call.1} parent=1 // pred_region
      _
    $region49: #{tpu_custom_call.1} parent=1 // pred_fallthru
      _
    // Predicated region
    $region50: #{tpu_custom_call.1} parent=1 // pred_check
      _
    $region51: #{tpu_custom_call.1} parent=1 // pred_check_branch
      %85 = sbr.rel (0) target = $region53
    $region52: #{tpu_custom_call.1} parent=1 // pred_region
      _
    $region53: #{tpu_custom_call.1} parent=1 // pred_fallthru
      _
    // Predicated region
    $region54: #{tpu_custom_call.1} parent=1 // pred_check
      _
    $region55: #{tpu_custom_call.1} parent=1 // pred_check_branch
      %87 = sbr.rel (0) target = $region57
    $region56: #{tpu_custom_call.1} parent=1 // pred_region
      _
    $region57: #{tpu_custom_call.1} parent=1 // pred_fallthru
      _
    // Predicated region
    $region58: #{tpu_custom_call.1} parent=1 // pred_check
      _
    $region59: #{tpu_custom_call.1} parent=1 // pred_check_branch
      %89 = sbr.rel (0) target = $region61
    $region60: #{tpu_custom_call.1} parent=1 // pred_region
      _
    $region61: #{tpu_custom_call.1} parent=1 // pred_fallthru
      _
    // Predicated region
    $region62: #{tpu_custom_call.1} parent=1 // pred_check
      _
    $region63: #{tpu_custom_call.1} parent=1 // pred_check_branch
      %91 = sbr.rel (0) target = $region65
    $region64: #{tpu_custom_call.1} parent=1 // pred_region
      _
    $region65: #{tpu_custom_call.1} parent=1 // pred_fallthru
      _
    // Predicated region
    $region66: #{tpu_custom_call.1} parent=1 // pred_check
      _
    $region67: #{tpu_custom_call.1} parent=1 // pred_check_branch
      %93 = sbr.rel (0) target = $region69
    $region68: #{tpu_custom_call.1} parent=1 // pred_region
      _
    $region69: #{tpu_custom_call.1} parent=1 // pred_fallthru
      _
    // Predicated region
    $region70: #{tpu_custom_call.1} parent=1 // pred_check
      _
    $region71: #{tpu_custom_call.1} parent=1 // pred_check_branch
      %95 = sbr.rel (0) target = $region73
    $region72: #{tpu_custom_call.1} parent=1 // pred_region
      _
    $region73: #{tpu_custom_call.1} parent=1 // pred_fallthru
      _
    // Predicated region
    $region74: #{tpu_custom_call.1} parent=1 // pred_check
      _
    $region75: #{tpu_custom_call.1} parent=1 // pred_check_branch
      %97 = sbr.rel (0) target = $region77
    $region76: #{tpu_custom_call.1} parent=1 // pred_region
      _
    $region77: #{tpu_custom_call.1} parent=1 // pred_fallthru
      _
    // Predicated region
    $region78: #{tpu_custom_call.1} parent=1 // pred_check
      _
    $region79: #{tpu_custom_call.1} parent=1 // pred_check_branch
      %99 = sbr.rel (0) target = $region81
    $region80: #{tpu_custom_call.1} parent=1 // pred_region
      _
    $region81: #{tpu_custom_call.1} parent=1 // pred_fallthru
      _
    // Predicated region
    $region82: #{tpu_custom_call.1} parent=1 // pred_check
      _
    $region83: #{tpu_custom_call.1} parent=1 // pred_check_branch
      %101 = sbr.rel (0) target = $region85
    $region84: #{tpu_custom_call.1} parent=1 // pred_region
      _
    $region85: #{tpu_custom_call.1} parent=1 // pred_fallthru
      _
    // Predicated region
    $region86: #{tpu_custom_call.1} parent=1 // pred_check
      _
    $region87: #{tpu_custom_call.1} parent=1 // pred_check_branch
      %103 = sbr.rel (0) target = $region89
    $region88: #{tpu_custom_call.1} parent=1 // pred_region
      _
    $region89: #{tpu_custom_call.1} parent=1 // pred_fallthru
      _
    // Predicated region
    $region90: #{tpu_custom_call.1} parent=1 // pred_check
      _
    $region91: #{tpu_custom_call.1} parent=1 // pred_check_branch
      %105 = sbr.rel (0) target = $region93
    $region92: #{tpu_custom_call.1} parent=1 // pred_region
      _
    $region93: #{tpu_custom_call.1} parent=1 // pred_fallthru
      _
    // Predicated region
    $region94: #{tpu_custom_call.1} parent=1 // pred_check
      _
    $region95: #{tpu_custom_call.1} parent=1 // pred_check_branch
      %107 = sbr.rel (0) target = $region97
    $region96: #{tpu_custom_call.1} parent=1 // pred_region
      %109 = dma.done [#allocation4], 16
    $region97: #{tpu_custom_call.1} parent=1 // pred_fallthru
      _
    // Predicated region
    $region98: #{tpu_custom_call.1} parent=1 // pred_check
      _
    $region99: #{tpu_custom_call.1} parent=1 // pred_check_branch
      %111 = sbr.rel (0) target = $region101
    $region100: #{tpu_custom_call.1} parent=1 // pred_region
      %113 = dma.done [#allocation3], 4096
    $region101: #{tpu_custom_call.1} parent=1 // pred_fallthru
      _
    // Predicated region
    $region102: #{tpu_custom_call.1} parent=1 // pred_check
      _
    $region103: #{tpu_custom_call.1} parent=1 // pred_check_branch
      %115 = sbr.rel (0) target = $region105
    $region104: #{tpu_custom_call.1} parent=1 // pred_region
      %117 = dma.done [#allocation7], 4096
    $region105: #{tpu_custom_call.1} parent=1 // pred_fallthru
      _
    %118 = sfence
    %v120 = vld [vmem:[%s1] sm:$0xff]
    %v121 = vld [vmem:[%s1 + $0x8] sm:$0xff]
    %v122 = vld [vmem:[%s2] sm:$0xff]
    %s123 = sld [smem:[#allocation2]]
    %v124 = vpack.c.bf16 %v120, %v120
    %v125 = vpack.c.bf16 %v121, %v121
    %v126 = vld [vmem:[#allocation5] sm:$0xff]
    %v127 = vld [vmem:[#allocation5 + $0x8] sm:$0xff]
    %v128 = vld [vmem:[#allocation5 + $0x10] sm:$0xff]
    %v129 = vld [vmem:[#allocation5 + $0x18] sm:$0xff]
    %v130 = vld [vmem:[#allocation5 + $0x20] sm:$0xff]
    %v131 = vld [vmem:[#allocation5 + $0x28] sm:$0xff]
    %v132 = vld [vmem:[#allocation5 + $0x30] sm:$0xff]
    %v133 = vld [vmem:[#allocation5 + $0x38] sm:$0xff]
    %v134 = vld [vmem:[#allocation5 + $0x40] sm:$0xff]
    %v135 = vld [vmem:[#allocation5 + $0x48] sm:$0xff]
    %v136 = vld [vmem:[#allocation5 + $0x50] sm:$0xff]
    %v137 = vld [vmem:[#allocation5 + $0x58] sm:$0xff]
    %v138 = vld [vmem:[#allocation5 + $0x60] sm:$0xff]
    %v139 = vld [vmem:[#allocation5 + $0x68] sm:$0xff]
    %v140 = vld [vmem:[#allocation5 + $0x70] sm:$0xff]
    %v141 = vld [vmem:[#allocation5 + $0x78] sm:$0xff]
    %v142 = vld [vmem:[#allocation5 + $0x80] sm:$0xff]
    %v143 = vld [vmem:[#allocation5 + $0x88] sm:$0xff]
    %v144 = vld [vmem:[#allocation5 + $0x90] sm:$0xff]
    %v145 = vld [vmem:[#allocation5 + $0x98] sm:$0xff]
    %v146 = vld [vmem:[#allocation5 + $0xa0] sm:$0xff]
    %v147 = vld [vmem:[#allocation5 + $0xa8] sm:$0xff]
    %v148 = vld [vmem:[#allocation5 + $0xb0] sm:$0xff]
    %v149 = vld [vmem:[#allocation5 + $0xb8] sm:$0xff]
    %v150 = vld [vmem:[#allocation5 + $0xc0] sm:$0xff]
    %v151 = vld [vmem:[#allocation5 + $0xc8] sm:$0xff]
    %v152 = vld [vmem:[#allocation5 + $0xd0] sm:$0xff]
    %v153 = vld [vmem:[#allocation5 + $0xd8] sm:$0xff]
    %v154 = vld [vmem:[#allocation5 + $0xe0] sm:$0xff]
    %v155 = vld [vmem:[#allocation5 + $0xe8] sm:$0xff]
    %v156 = vld [vmem:[#allocation5 + $0xf0] sm:$0xff]
    %v157 = vld [vmem:[#allocation5 + $0xf8] sm:$0xff]
    %v190 = vunpack.c.l.b16 %v126
    %v191 = vunpack.c.h.b16 %v126
    %v192 = vunpack.c.l.b16 %v127
    %v193 = vunpack.c.h.b16 %v127
    %v194 = vunpack.c.l.b16 %v128
    %v195 = vunpack.c.h.b16 %v128
    %v196 = vunpack.c.l.b16 %v129
    %v197 = vunpack.c.h.b16 %v129
    %v198 = vunpack.c.l.b16 %v130
    %v199 = vunpack.c.h.b16 %v130
    %v200 = vunpack.c.l.b16 %v131
    %v201 = vunpack.c.h.b16 %v131
    %v202 = vunpack.c.l.b16 %v132
    %v203 = vunpack.c.h.b16 %v132
    %v204 = vunpack.c.l.b16 %v133
    %v205 = vunpack.c.h.b16 %v133
    %v206 = vunpack.c.l.b16 %v134
    %v207 = vunpack.c.h.b16 %v134
    %v208 = vunpack.c.l.b16 %v135
    %v209 = vunpack.c.h.b16 %v135
    %v210 = vunpack.c.l.b16 %v136
    %v211 = vunpack.c.h.b16 %v136
    %v212 = vunpack.c.l.b16 %v137
    %v213 = vunpack.c.h.b16 %v137
    %v214 = vunpack.c.l.b16 %v138
    %v215 = vunpack.c.h.b16 %v138
    %v216 = vunpack.c.l.b16 %v139
    %v217 = vunpack.c.h.b16 %v139
    %v218 = vunpack.c.l.b16 %v140
    %v219 = vunpack.c.h.b16 %v140
    %v220 = vunpack.c.l.b16 %v141
    %v221 = vunpack.c.h.b16 %v141
    %v222 = vunpack.c.l.b16 %v142
    %v223 = vunpack.c.h.b16 %v142
    %v224 = vunpack.c.l.b16 %v143
    %v225 = vunpack.c.h.b16 %v143
    %v226 = vunpack.c.l.b16 %v144
    %v227 = vunpack.c.h.b16 %v144
    %v228 = vunpack.c.l.b16 %v145
    %v229 = vunpack.c.h.b16 %v145
    %v230 = vunpack.c.l.b16 %v146
    %v231 = vunpack.c.h.b16 %v146
    %v232 = vunpack.c.l.b16 %v147
    %v233 = vunpack.c.h.b16 %v147
    %v234 = vunpack.c.l.b16 %v148
    %v235 = vunpack.c.h.b16 %v148
    %v236 = vunpack.c.l.b16 %v149
    %v237 = vunpack.c.h.b16 %v149
    %v238 = vunpack.c.l.b16 %v150
    %v239 = vunpack.c.h.b16 %v150
    %v240 = vunpack.c.l.b16 %v151
    %v241 = vunpack.c.h.b16 %v151
    %v242 = vunpack.c.l.b16 %v152
    %v243 = vunpack.c.h.b16 %v152
    %v244 = vunpack.c.l.b16 %v153
    %v245 = vunpack.c.h.b16 %v153
    %v246 = vunpack.c.l.b16 %v154
    %v247 = vunpack.c.h.b16 %v154
    %v248 = vunpack.c.l.b16 %v155
    %v249 = vunpack.c.h.b16 %v155
    %v250 = vunpack.c.l.b16 %v156
    %v251 = vunpack.c.h.b16 %v156
    %v252 = vunpack.c.l.b16 %v157
    %v253 = vunpack.c.h.b16 %v157
    %v254 = vpack.c.b16 %v192, %v190
    %v255 = vpack.c.b16 %v193, %v191
    %v256 = vpack.c.b16 %v196, %v194
    %v257 = vpack.c.b16 %v197, %v195
    %v258 = vpack.c.b16 %v200, %v198
    %v259 = vpack.c.b16 %v201, %v199
    %v260 = vpack.c.b16 %v204, %v202
    %v261 = vpack.c.b16 %v205, %v203
    %v262 = vpack.c.b16 %v208, %v206
    %v263 = vpack.c.b16 %v209, %v207
    %v264 = vpack.c.b16 %v212, %v210
    %v265 = vpack.c.b16 %v213, %v211
    %v266 = vpack.c.b16 %v216, %v214
    %v267 = vpack.c.b16 %v217, %v215
    %v268 = vpack.c.b16 %v220, %v218
    %v269 = vpack.c.b16 %v221, %v219
    %v270 = vpack.c.b16 %v224, %v222
    %v271 = vpack.c.b16 %v225, %v223
    %v272 = vpack.c.b16 %v228, %v226
    %v273 = vpack.c.b16 %v229, %v227
    %v274 = vpack.c.b16 %v232, %v230
    %v275 = vpack.c.b16 %v233, %v231
    %v276 = vpack.c.b16 %v236, %v234
    %v277 = vpack.c.b16 %v237, %v235
    %v278 = vpack.c.b16 %v240, %v238
    %v279 = vpack.c.b16 %v241, %v239
    %v280 = vpack.c.b16 %v244, %v242
    %v281 = vpack.c.b16 %v245, %v243
    %v282 = vpack.c.b16 %v248, %v246
    %v283 = vpack.c.b16 %v249, %v247
    %v284 = vpack.c.b16 %v252, %v250
    %v285 = vpack.c.b16 %v253, %v251
    %318 = vmatpush.bf16.msra.mxu0 %v268
    %319 = vmatpush.bf16.msra.mxu0 %v266
    %320 = vmatpush.bf16.msra.mxu0 %v264
    %321 = vmatpush.bf16.msra.mxu0 %v262
    %322 = vmatpush.bf16.msra.mxu0 %v260
    %323 = vmatpush.bf16.msra.mxu0 %v258
    %324 = vmatpush.bf16.msra.mxu0 %v256
    %325 = vmatpush.bf16.msra.mxu0 %v254
    %326 = vmatmul.bf16.gmra.mxu0 %v124
    %v327 = vpop.f32.mrf.mxu0
    %v328 = vadd.f32 0.0, %v327
    %v329 = vpop.f32.mrf.mxu0
    %330 = vdwg.mxu0
    %331 = vmatpush.bf16.msra.mxu0 %v284
    %332 = vmatpush.bf16.msra.mxu0 %v282
    %333 = vmatpush.bf16.msra.mxu0 %v280
    %334 = vmatpush.bf16.msra.mxu0 %v278
    %335 = vmatpush.bf16.msra.mxu0 %v276
    %336 = vmatpush.bf16.msra.mxu0 %v274
    %337 = vmatpush.bf16.msra.mxu0 %v272
    %338 = vmatpush.bf16.msra.mxu0 %v270
    %339 = vmatmul.bf16.gmra.mxu0 %v125
    %v340 = vpop.f32.mrf.mxu0
    %v341 = vadd.f32 %v328, %v340
    %v342 = vpop.f32.mrf.mxu0
    %343 = vdwg.mxu0
    %344 = vmatpush.bf16.msra.mxu0 %v269
    %345 = vmatpush.bf16.msra.mxu0 %v267
    %346 = vmatpush.bf16.msra.mxu0 %v265
    %347 = vmatpush.bf16.msra.mxu0 %v263
    %348 = vmatpush.bf16.msra.mxu0 %v261
    %349 = vmatpush.bf16.msra.mxu0 %v259
    %350 = vmatpush.bf16.msra.mxu0 %v257
    %351 = vmatpush.bf16.msra.mxu0 %v255
    %352 = vmatmul.bf16.gmra.mxu0 %v124
    %v353 = vpop.f32.mrf.mxu0
    %v354 = vadd.f32 0.0, %v353
    %v355 = vpop.f32.mrf.mxu0
    %356 = vdwg.mxu0
    %357 = vmatpush.bf16.msra.mxu0 %v285
    %358 = vmatpush.bf16.msra.mxu0 %v283
    %359 = vmatpush.bf16.msra.mxu0 %v281
    %360 = vmatpush.bf16.msra.mxu0 %v279
    %361 = vmatpush.bf16.msra.mxu0 %v277
    %362 = vmatpush.bf16.msra.mxu0 %v275
    %363 = vmatpush.bf16.msra.mxu0 %v273
    %364 = vmatpush.bf16.msra.mxu0 %v271
    %365 = vmatmul.bf16.gmra.mxu0 %v125
    %v366 = vpop.f32.mrf.mxu0
    %v367 = vadd.f32 %v354, %v366
    %v368 = vpop.f32.mrf.mxu0
    %369 = vdwg.mxu0
    %v370 = vld [vmem:[%s4] sm:$0xf]
    %v371 = vrot.slane %v341, 4
    %v372 = vadd.f32 %v341, %v371
    %v373 = vrot.slane %v372, 2
    %v374 = vadd.f32 %v372, %v373
    %v375 = vrot.slane %v374, 1
    %v376 = vadd.f32 %v374, %v375
    %v377 = vrot.slane %v367, 4
    %v378 = vadd.f32 %v367, %v377
    %v379 = vrot.slane %v378, 2
    %v380 = vadd.f32 %v378, %v379
    %v381 = vrot.slane %v380, 1
    %v382 = vadd.f32 %v380, %v381
    %v383 = vrcp.pop 8.0
    %v384 = vmul.f32 8.0, %v383
    %v385 = vsub.f32 1.0, %v384
    %v386 = vmul.f32 %v383, %v385
    %v387 = vadd.f32 %v383, %v386
    %vm388 = vweird.f32 %v383
    %v389 = vsel %vm388, %v383, %v387
    %v390 = vmul.f32 %v376, %v389
    %v391 = vmul.f32 %v382, %v389
    %v392 = vsub.f32 %v341, %v390
    %v393 = vsub.f32 %v367, %v391
    %v394 = vmul.f32 %v392, %v392
    %v395 = vmul.f32 %v393, %v393
    %v396 = vrot.slane %v394, 4
    %v397 = vadd.f32 %v394, %v396
    %v398 = vrot.slane %v397, 2
    %v399 = vadd.f32 %v397, %v398
    %v400 = vrot.slane %v399, 1
    %v401 = vadd.f32 %v399, %v400
    %v402 = vrot.slane %v395, 4
    %v403 = vadd.f32 %v395, %v402
    %v404 = vrot.slane %v403, 2
    %v405 = vadd.f32 %v403, %v404
    %v406 = vrot.slane %v405, 1
    %v407 = vadd.f32 %v405, %v406
    %v408 = vmul.f32 %v401, %v389
    %v409 = vmul.f32 %v407, %v389
    %v410 = vadd.f32 %v408, 1e-05
    %v411 = vadd.f32 %v409, 1e-05
    %v412 = vrsqrt.pop %v410
    %v413 = vmul.f32 %v412, %v410
    %v414 = vmul.f32 %v413, %v412
    %v415 = vmul.f32 0.5, %v414
    %v416 = vsub.f32 1.5, %v415
    %v417 = vmul.f32 %v412, %v416
    %vm418 = vweird.f32 %v410
    %vm419 = vweird.f32 %v412
    %vm420 = vmor %vm418, %vm419
    %v421 = vsel %vm420, %v412, %v417
    %v422 = vrsqrt.pop %v411
    %v423 = vmul.f32 %v422, %v411
    %v424 = vmul.f32 %v423, %v422
    %v425 = vmul.f32 0.5, %v424
    %v426 = vsub.f32 1.5, %v425
    %v427 = vmul.f32 %v422, %v426
    %vm428 = vweird.f32 %v411
    %vm429 = vweird.f32 %v422
    %vm430 = vmor %vm428, %vm429
    %v431 = vsel %vm430, %v422, %v427
    %v434 = vrot.slane %v431, 6
    %vm435 = vcmask 1041408
    %v436 = vsel %vm435, %v421, %v434
    %v438 = vmul.f32 %v370, %v436
    %v440 = vperm.slane %v438, 0
    %v441 = vperm.slane %v438, 2
    %v444 = vperm.slane %v440, 0
    %v445 = vperm.slane %v441, 0
    %v446 = vmul.f32 %v392, %v444
    %v447 = vmul.f32 %v393, %v445
    %v449 = vperm.slane %v370, 1
    %v450 = vperm.slane %v370, 3
    %v453 = vperm.slane %v449, 1
    %v454 = vperm.slane %v450, 1
    %v455 = vadd.f32 %v446, %v453
    %v456 = vadd.f32 %v447, %v454
    %vm457 = vcmp.ge.f32.partialorder %v455, 0.0
    %vm458 = vcmp.ge.f32.partialorder %v456, 0.0
    %v459 = vstv %s123
    %v460 = vmul.f32 %v459, %v455
    %v461 = vmul.f32 %v459, %v456
    %v462 = vsel %vm457, %v455, %v460
    %v463 = vsel %vm458, %v456, %v461
    %s464 = sld [smem:[#allocation2 + $0x1]]
    %v465 = vpack.c.bf16 %v462, %v462
    %v466 = vpack.c.bf16 %v463, %v463
    %v467 = vld [vmem:[#allocation6] sm:$0xff]
    %v468 = vld [vmem:[#allocation6 + $0x8] sm:$0xff]
    %v469 = vld [vmem:[#allocation6 + $0x10] sm:$0xff]
    %v470 = vld [vmem:[#allocation6 + $0x18] sm:$0xff]
    %v471 = vld [vmem:[#allocation6 + $0x20] sm:$0xff]
    %v472 = vld [vmem:[#allocation6 + $0x28] sm:$0xff]
    %v473 = vld [vmem:[#allocation6 + $0x30] sm:$0xff]
    %v474 = vld [vmem:[#allocation6 + $0x38] sm:$0xff]
    %v475 = vld [vmem:[#allocation6 + $0x40] sm:$0xff]
    %v476 = vld [vmem:[#allocation6 + $0x48] sm:$0xff]
    %v477 = vld [vmem:[#allocation6 + $0x50] sm:$0xff]
    %v478 = vld [vmem:[#allocation6 + $0x58] sm:$0xff]
    %v479 = vld [vmem:[#allocation6 + $0x60] sm:$0xff]
    %v480 = vld [vmem:[#allocation6 + $0x68] sm:$0xff]
    %v481 = vld [vmem:[#allocation6 + $0x70] sm:$0xff]
    %v482 = vld [vmem:[#allocation6 + $0x78] sm:$0xff]
    %v483 = vld [vmem:[#allocation6 + $0x80] sm:$0xff]
    %v484 = vld [vmem:[#allocation6 + $0x88] sm:$0xff]
    %v485 = vld [vmem:[#allocation6 + $0x90] sm:$0xff]
    %v486 = vld [vmem:[#allocation6 + $0x98] sm:$0xff]
    %v487 = vld [vmem:[#allocation6 + $0xa0] sm:$0xff]
    %v488 = vld [vmem:[#allocation6 + $0xa8] sm:$0xff]
    %v489 = vld [vmem:[#allocation6 + $0xb0] sm:$0xff]
    %v490 = vld [vmem:[#allocation6 + $0xb8] sm:$0xff]
    %v491 = vld [vmem:[#allocation6 + $0xc0] sm:$0xff]
    %v492 = vld [vmem:[#allocation6 + $0xc8] sm:$0xff]
    %v493 = vld [vmem:[#allocation6 + $0xd0] sm:$0xff]
    %v494 = vld [vmem:[#allocation6 + $0xd8] sm:$0xff]
    %v495 = vld [vmem:[#allocation6 + $0xe0] sm:$0xff]
    %v496 = vld [vmem:[#allocation6 + $0xe8] sm:$0xff]
    %v497 = vld [vmem:[#allocation6 + $0xf0] sm:$0xff]
    %v498 = vld [vmem:[#allocation6 + $0xf8] sm:$0xff]
    %v531 = vunpack.c.l.b16 %v467
    %v532 = vunpack.c.h.b16 %v467
    %v533 = vunpack.c.l.b16 %v468
    %v534 = vunpack.c.h.b16 %v468
    %v535 = vunpack.c.l.b16 %v469
    %v536 = vunpack.c.h.b16 %v469
    %v537 = vunpack.c.l.b16 %v470
    %v538 = vunpack.c.h.b16 %v470
    %v539 = vunpack.c.l.b16 %v471
    %v540 = vunpack.c.h.b16 %v471
    %v541 = vunpack.c.l.b16 %v472
    %v542 = vunpack.c.h.b16 %v472
    %v543 = vunpack.c.l.b16 %v473
    %v544 = vunpack.c.h.b16 %v473
    %v545 = vunpack.c.l.b16 %v474
    %v546 = vunpack.c.h.b16 %v474
    %v547 = vunpack.c.l.b16 %v475
    %v548 = vunpack.c.h.b16 %v475
    %v549 = vunpack.c.l.b16 %v476
    %v550 = vunpack.c.h.b16 %v476
    %v551 = vunpack.c.l.b16 %v477
    %v552 = vunpack.c.h.b16 %v477
    %v553 = vunpack.c.l.b16 %v478
    %v554 = vunpack.c.h.b16 %v478
    %v555 = vunpack.c.l.b16 %v479
    %v556 = vunpack.c.h.b16 %v479
    %v557 = vunpack.c.l.b16 %v480
    %v558 = vunpack.c.h.b16 %v480
    %v559 = vunpack.c.l.b16 %v481
    %v560 = vunpack.c.h.b16 %v481
    %v561 = vunpack.c.l.b16 %v482
    %v562 = vunpack.c.h.b16 %v482
    %v563 = vunpack.c.l.b16 %v483
    %v564 = vunpack.c.h.b16 %v483
    %v565 = vunpack.c.l.b16 %v484
    %v566 = vunpack.c.h.b16 %v484
    %v567 = vunpack.c.l.b16 %v485
    %v568 = vunpack.c.h.b16 %v485
    %v569 = vunpack.c.l.b16 %v486
    %v570 = vunpack.c.h.b16 %v486
    %v571 = vunpack.c.l.b16 %v487
    %v572 = vunpack.c.h.b16 %v487
    %v573 = vunpack.c.l.b16 %v488
    %v574 = vunpack.c.h.b16 %v488
    %v575 = vunpack.c.l.b16 %v489
    %v576 = vunpack.c.h.b16 %v489
    %v577 = vunpack.c.l.b16 %v490
    %v578 = vunpack.c.h.b16 %v490
    %v579 = vunpack.c.l.b16 %v491
    %v580 = vunpack.c.h.b16 %v491
    %v581 = vunpack.c.l.b16 %v492
    %v582 = vunpack.c.h.b16 %v492
    %v583 = vunpack.c.l.b16 %v493
    %v584 = vunpack.c.h.b16 %v493
    %v585 = vunpack.c.l.b16 %v494
    %v586 = vunpack.c.h.b16 %v494
    %v587 = vunpack.c.l.b16 %v495
    %v588 = vunpack.c.h.b16 %v495
    %v589 = vunpack.c.l.b16 %v496
    %v590 = vunpack.c.h.b16 %v496
    %v591 = vunpack.c.l.b16 %v497
    %v592 = vunpack.c.h.b16 %v497
    %v593 = vunpack.c.l.b16 %v498
    %v594 = vunpack.c.h.b16 %v498
    %v595 = vpack.c.b16 %v533, %v531
    %v596 = vpack.c.b16 %v534, %v532
    %v597 = vpack.c.b16 %v537, %v535
    %v598 = vpack.c.b16 %v538, %v536
    %v599 = vpack.c.b16 %v541, %v539
    %v600 = vpack.c.b16 %v542, %v540
    %v601 = vpack.c.b16 %v545, %v543
    %v602 = vpack.c.b16 %v546, %v544
    %v603 = vpack.c.b16 %v549, %v547
    %v604 = vpack.c.b16 %v550, %v548
    %v605 = vpack.c.b16 %v553, %v551
    %v606 = vpack.c.b16 %v554, %v552
    %v607 = vpack.c.b16 %v557, %v555
    %v608 = vpack.c.b16 %v558, %v556
    %v609 = vpack.c.b16 %v561, %v559
    %v610 = vpack.c.b16 %v562, %v560
    %v611 = vpack.c.b16 %v565, %v563
    %v612 = vpack.c.b16 %v566, %v564
    %v613 = vpack.c.b16 %v569, %v567
    %v614 = vpack.c.b16 %v570, %v568
    %v615 = vpack.c.b16 %v573, %v571
    %v616 = vpack.c.b16 %v574, %v572
    %v617 = vpack.c.b16 %v577, %v575
    %v618 = vpack.c.b16 %v578, %v576
    %v619 = vpack.c.b16 %v581, %v579
    %v620 = vpack.c.b16 %v582, %v580
    %v621 = vpack.c.b16 %v585, %v583
    %v622 = vpack.c.b16 %v586, %v584
    %v623 = vpack.c.b16 %v589, %v587
    %v624 = vpack.c.b16 %v590, %v588
    %v625 = vpack.c.b16 %v593, %v591
    %v626 = vpack.c.b16 %v594, %v592
    %659 = vmatpush.bf16.msra.mxu0 %v609
    %660 = vmatpush.bf16.msra.mxu0 %v607
    %661 = vmatpush.bf16.msra.mxu0 %v605
    %662 = vmatpush.bf16.msra.mxu0 %v603
    %663 = vmatpush.bf16.msra.mxu0 %v601
    %664 = vmatpush.bf16.msra.mxu0 %v599
    %665 = vmatpush.bf16.msra.mxu0 %v597
    %666 = vmatpush.bf16.msra.mxu0 %v595
    %667 = vmatmul.bf16.gmra.mxu0 %v465
    %v668 = vpop.f32.mrf.mxu0
    %v669 = vadd.f32 0.0, %v668
    %v670 = vpop.f32.mrf.mxu0
    %671 = vdwg.mxu0
    %672 = vmatpush.bf16.msra.mxu0 %v625
    %673 = vmatpush.bf16.msra.mxu0 %v623
    %674 = vmatpush.bf16.msra.mxu0 %v621
    %675 = vmatpush.bf16.msra.mxu0 %v619
    %676 = vmatpush.bf16.msra.mxu0 %v617
    %677 = vmatpush.bf16.msra.mxu0 %v615
    %678 = vmatpush.bf16.msra.mxu0 %v613
    %679 = vmatpush.bf16.msra.mxu0 %v611
    %680 = vmatmul.bf16.gmra.mxu0 %v466
    %v681 = vpop.f32.mrf.mxu0
    %v682 = vadd.f32 %v669, %v681
    %v683 = vpop.f32.mrf.mxu0
    %684 = vdwg.mxu0
    %685 = vmatpush.bf16.msra.mxu0 %v610
    %686 = vmatpush.bf16.msra.mxu0 %v608
    %687 = vmatpush.bf16.msra.mxu0 %v606
    %688 = vmatpush.bf16.msra.mxu0 %v604
    %689 = vmatpush.bf16.msra.mxu0 %v602
    %690 = vmatpush.bf16.msra.mxu0 %v600
    %691 = vmatpush.bf16.msra.mxu0 %v598
    %692 = vmatpush.bf16.msra.mxu0 %v596
    %693 = vmatmul.bf16.gmra.mxu0 %v465
    %v694 = vpop.f32.mrf.mxu0
    %v695 = vadd.f32 0.0, %v694
    %v696 = vpop.f32.mrf.mxu0
    %697 = vdwg.mxu0
    %698 = vmatpush.bf16.msra.mxu0 %v626
    %699 = vmatpush.bf16.msra.mxu0 %v624
    %700 = vmatpush.bf16.msra.mxu0 %v622
    %701 = vmatpush.bf16.msra.mxu0 %v620
    %702 = vmatpush.bf16.msra.mxu0 %v618
    %703 = vmatpush.bf16.msra.mxu0 %v616
    %704 = vmatpush.bf16.msra.mxu0 %v614
    %705 = vmatpush.bf16.msra.mxu0 %v612
    %706 = vmatmul.bf16.gmra.mxu0 %v466
    %v707 = vpop.f32.mrf.mxu0
    %v708 = vadd.f32 %v695, %v707
    %v709 = vpop.f32.mrf.mxu0
    %710 = vdwg.mxu0
    %v711 = vld [vmem:[%s6] sm:$0xf]
    %v712 = vrot.slane %v682, 4
    %v713 = vadd.f32 %v682, %v712
    %v714 = vrot.slane %v713, 2
    %v715 = vadd.f32 %v713, %v714
    %v716 = vrot.slane %v715, 1
    %v717 = vadd.f32 %v715, %v716
    %v718 = vrot.slane %v708, 4
    %v719 = vadd.f32 %v708, %v718
    %v720 = vrot.slane %v719, 2
    %v721 = vadd.f32 %v719, %v720
    %v722 = vrot.slane %v721, 1
    %v723 = vadd.f32 %v721, %v722
    %v724 = vmul.f32 %v717, %v389
    %v725 = vmul.f32 %v723, %v389
    %v726 = vsub.f32 %v682, %v724
    %v727 = vsub.f32 %v708, %v725
    %v728 = vmul.f32 %v726, %v726
    %v729 = vmul.f32 %v727, %v727
    %v730 = vrot.slane %v728, 4
    %v731 = vadd.f32 %v728, %v730
    %v732 = vrot.slane %v731, 2
    %v733 = vadd.f32 %v731, %v732
    %v734 = vrot.slane %v733, 1
    %v735 = vadd.f32 %v733, %v734
    %v736 = vrot.slane %v729, 4
    %v737 = vadd.f32 %v729, %v736
    %v738 = vrot.slane %v737, 2
    %v739 = vadd.f32 %v737, %v738
    %v740 = vrot.slane %v739, 1
    %v741 = vadd.f32 %v739, %v740
    %v742 = vmul.f32 %v735, %v389
    %v743 = vmul.f32 %v741, %v389
    %v744 = vadd.f32 %v742, 1e-05
    %v745 = vadd.f32 %v743, 1e-05
    %v746 = vrsqrt.pop %v744
    %v747 = vmul.f32 %v746, %v744
    %v748 = vmul.f32 %v747, %v746
    %v749 = vmul.f32 0.5, %v748
    %v750 = vsub.f32 1.5, %v749
    %v751 = vmul.f32 %v746, %v750
    %vm752 = vweird.f32 %v744
    %vm753 = vweird.f32 %v746
    %vm754 = vmor %vm752, %vm753
    %v755 = vsel %vm754, %v746, %v751
    %v756 = vrsqrt.pop %v745
    %v757 = vmul.f32 %v756, %v745
    %v758 = vmul.f32 %v757, %v756
    %v759 = vmul.f32 0.5, %v758
    %v760 = vsub.f32 1.5, %v759
    %v761 = vmul.f32 %v756, %v760
    %vm762 = vweird.f32 %v745
    %vm763 = vweird.f32 %v756
    %vm764 = vmor %vm762, %vm763
    %v765 = vsel %vm764, %v756, %v761
    %v768 = vrot.slane %v765, 6
    %v769 = vsel %vm435, %v755, %v768
    %v771 = vmul.f32 %v711, %v769
    %v773 = vperm.slane %v771, 0
    %v774 = vperm.slane %v771, 2
    %v777 = vperm.slane %v773, 0
    %v778 = vperm.slane %v774, 0
    %v779 = vmul.f32 %v726, %v777
    %v780 = vmul.f32 %v727, %v778
    %v782 = vperm.slane %v711, 1
    %v783 = vperm.slane %v711, 3
    %v786 = vperm.slane %v782, 1
    %v787 = vperm.slane %v783, 1
    %v788 = vadd.f32 %v779, %v786
    %v789 = vadd.f32 %v780, %v787
    %vm790 = vcmp.ge.f32.partialorder %v788, 0.0
    %vm791 = vcmp.ge.f32.partialorder %v789, 0.0
    %v792 = vstv %s464
    %v793 = vmul.f32 %v792, %v788
    %v794 = vmul.f32 %v792, %v789
    %v795 = vsel %vm790, %v788, %v793
    %v796 = vsel %vm791, %v789, %v794
    %s797 = sld [smem:[#allocation2 + $0x2]]
    %v798 = vpack.c.bf16 %v795, %v795
    %v799 = vpack.c.bf16 %v796, %v796
    %v800 = vld [vmem:[%s7] sm:$0xf]
    %v801 = vld [vmem:[%s7 + $0x4] sm:$0xf]
    %v802 = vld [vmem:[%s7 + $0x8] sm:$0xf]
    %v803 = vld [vmem:[%s7 + $0xc] sm:$0xf]
    %v804 = vld [vmem:[%s7 + $0x10] sm:$0xf]
    %v805 = vld [vmem:[%s7 + $0x14] sm:$0xf]
    %v806 = vld [vmem:[%s7 + $0x18] sm:$0xf]
    %v807 = vld [vmem:[%s7 + $0x1c] sm:$0xf]
    %v808 = vld [vmem:[%s7 + $0x20] sm:$0xf]
    %v809 = vld [vmem:[%s7 + $0x24] sm:$0xf]
    %v810 = vld [vmem:[%s7 + $0x28] sm:$0xf]
    %v811 = vld [vmem:[%s7 + $0x2c] sm:$0xf]
    %v812 = vld [vmem:[%s7 + $0x30] sm:$0xf]
    %v813 = vld [vmem:[%s7 + $0x34] sm:$0xf]
    %v814 = vld [vmem:[%s7 + $0x38] sm:$0xf]
    %v815 = vld [vmem:[%s7 + $0x3c] sm:$0xf]
    %v816 = vld [vmem:[%s7 + $0x40] sm:$0xf]
    %v817 = vld [vmem:[%s7 + $0x44] sm:$0xf]
    %v818 = vld [vmem:[%s7 + $0x48] sm:$0xf]
    %v819 = vld [vmem:[%s7 + $0x4c] sm:$0xf]
    %v820 = vld [vmem:[%s7 + $0x50] sm:$0xf]
    %v821 = vld [vmem:[%s7 + $0x54] sm:$0xf]
    %v822 = vld [vmem:[%s7 + $0x58] sm:$0xf]
    %v823 = vld [vmem:[%s7 + $0x5c] sm:$0xf]
    %v824 = vld [vmem:[%s7 + $0x60] sm:$0xf]
    %v825 = vld [vmem:[%s7 + $0x64] sm:$0xf]
    %v826 = vld [vmem:[%s7 + $0x68] sm:$0xf]
    %v827 = vld [vmem:[%s7 + $0x6c] sm:$0xf]
    %v828 = vld [vmem:[%s7 + $0x70] sm:$0xf]
    %v829 = vld [vmem:[%s7 + $0x74] sm:$0xf]
    %v830 = vld [vmem:[%s7 + $0x78] sm:$0xf]
    %v831 = vld [vmem:[%s7 + $0x7c] sm:$0xf]
    %v864 = vunpack.c.l.b16 %v800
    %v865 = vunpack.c.l.b16 %v801
    %v866 = vunpack.c.l.b16 %v802
    %v867 = vunpack.c.l.b16 %v803
    %v868 = vunpack.c.l.b16 %v804
    %v869 = vunpack.c.l.b16 %v805
    %v870 = vunpack.c.l.b16 %v806
    %v871 = vunpack.c.l.b16 %v807
    %v872 = vunpack.c.l.b16 %v808
    %v873 = vunpack.c.l.b16 %v809
    %v874 = vunpack.c.l.b16 %v810
    %v875 = vunpack.c.l.b16 %v811
    %v876 = vunpack.c.l.b16 %v812
    %v877 = vunpack.c.l.b16 %v813
    %v878 = vunpack.c.l.b16 %v814
    %v879 = vunpack.c.l.b16 %v815
    %v880 = vunpack.c.l.b16 %v816
    %v881 = vunpack.c.l.b16 %v817
    %v882 = vunpack.c.l.b16 %v818
    %v883 = vunpack.c.l.b16 %v819
    %v884 = vunpack.c.l.b16 %v820
    %v885 = vunpack.c.l.b16 %v821
    %v886 = vunpack.c.l.b16 %v822
    %v887 = vunpack.c.l.b16 %v823
    %v888 = vunpack.c.l.b16 %v824
    %v889 = vunpack.c.l.b16 %v825
    %v890 = vunpack.c.l.b16 %v826
    %v891 = vunpack.c.l.b16 %v827
    %v892 = vunpack.c.l.b16 %v828
    %v893 = vunpack.c.l.b16 %v829
    %v894 = vunpack.c.l.b16 %v830
    %v895 = vunpack.c.l.b16 %v831
    %v896 = vpack.c.b16 %v865, %v864
    %v897 = vpack.c.b16 %v867, %v866
    %v898 = vpack.c.b16 %v869, %v868
    %v899 = vpack.c.b16 %v871, %v870
    %v900 = vpack.c.b16 %v873, %v872
    %v901 = vpack.c.b16 %v875, %v874
    %v902 = vpack.c.b16 %v877, %v876
    %v903 = vpack.c.b16 %v879, %v878
    %v904 = vpack.c.b16 %v881, %v880
    %v905 = vpack.c.b16 %v883, %v882
    %v906 = vpack.c.b16 %v885, %v884
    %v907 = vpack.c.b16 %v887, %v886
    %v908 = vpack.c.b16 %v889, %v888
    %v909 = vpack.c.b16 %v891, %v890
    %v910 = vpack.c.b16 %v893, %v892
    %v911 = vpack.c.b16 %v895, %v894
    %928 = vmatpush.bf16.msra.mxu0 %v903
    %929 = vmatpush.bf16.msra.mxu0 %v902
    %930 = vmatpush.bf16.msra.mxu0 %v901
    %931 = vmatpush.bf16.msra.mxu0 %v900
    %932 = vmatpush.bf16.msra.mxu0 %v899
    %933 = vmatpush.bf16.msra.mxu0 %v898
    %934 = vmatpush.bf16.msra.mxu0 %v897
    %935 = vmatpush.bf16.msra.mxu0 %v896
    %936 = vmatmul.bf16.gmra.mxu0 %v798
    %v937 = vpop.f32.mrf.mxu0
    %v938 = vadd.f32 0.0, %v937
    %v939 = vpop.f32.mrf.mxu0
    %940 = vdwg.mxu0
    %941 = vmatpush.bf16.msra.mxu0 %v911
    %942 = vmatpush.bf16.msra.mxu0 %v910
    %943 = vmatpush.bf16.msra.mxu0 %v909
    %944 = vmatpush.bf16.msra.mxu0 %v908
    %945 = vmatpush.bf16.msra.mxu0 %v907
    %946 = vmatpush.bf16.msra.mxu0 %v906
    %947 = vmatpush.bf16.msra.mxu0 %v905
    %948 = vmatpush.bf16.msra.mxu0 %v904
    %949 = vmatmul.bf16.gmra.mxu0 %v799
    %v950 = vpop.f32.mrf.mxu0
    %v951 = vadd.f32 %v938, %v950
    %v952 = vpop.f32.mrf.mxu0
    %953 = vdwg.mxu0
    %v954 = vld [vmem:[%s8] sm:$0x3]
    %vm955 = vcmask 523264
    %v956 = vsel %vm955, %v951, 0.0
    %v957 = vrot.slane %v956, 4
    %v958 = vadd.f32 %v956, %v957
    %v959 = vrot.slane %v958, 2
    %v960 = vadd.f32 %v958, %v959
    %v961 = vrot.slane %v960, 1
    %v962 = vadd.f32 %v960, %v961
    %v963 = vmul.f32 %v962, %v389
    %v964 = vsub.f32 %v951, %v963
    %v965 = vmul.f32 %v964, %v964
    %v966 = vsel %vm955, %v965, 0.0
    %v967 = vrot.slane %v966, 4
    %v968 = vadd.f32 %v966, %v967
    %v969 = vrot.slane %v968, 2
    %v970 = vadd.f32 %v968, %v969
    %v971 = vrot.slane %v970, 1
    %v972 = vadd.f32 %v970, %v971
    %v973 = vmul.f32 %v972, %v389
    %v974 = vadd.f32 %v973, 1e-05
    %v975 = vrsqrt.pop %v974
    %v976 = vmul.f32 %v975, %v974
    %v977 = vmul.f32 %v976, %v975
    %v978 = vmul.f32 0.5, %v977
    %v979 = vsub.f32 1.5, %v978
    %v980 = vmul.f32 %v975, %v979
    %vm981 = vweird.f32 %v974
    %vm982 = vweird.f32 %v975
    %vm983 = vmor %vm981, %vm982
    %v984 = vsel %vm983, %v975, %v980
    %v985 = vmul.f32 %v954, %v984
    %v986 = vperm.slane %v985, 0
    %v987 = vmul.f32 %v964, %v986
    %v988 = vperm.slane %v954, 1
    %v989 = vadd.f32 %v987, %v988
    %vm990 = vcmp.ge.f32.partialorder %v989, 0.0
    %v991 = vstv %s797
    %v992 = vmul.f32 %v991, %v989
    %v993 = vsel %vm990, %v989, %v992
    %s994 = sld [smem:[#allocation2 + $0x3]]
    %v995 = vpack.c.bf16 %v122, %v122
    %v996 = vld [vmem:[%s9] sm:$0xf]
    %v997 = vld [vmem:[%s9 + $0x4] sm:$0xf]
    %v998 = vld [vmem:[%s9 + $0x8] sm:$0xf]
    %v999 = vld [vmem:[%s9 + $0xc] sm:$0xf]
    %v1000 = vld [vmem:[%s9 + $0x10] sm:$0xf]
    %v1001 = vld [vmem:[%s9 + $0x14] sm:$0xf]
    %v1002 = vld [vmem:[%s9 + $0x18] sm:$0xf]
    %v1010 = vunpack.c.l.b16 %v996
    %v1011 = vunpack.c.l.b16 %v997
    %v1012 = vunpack.c.l.b16 %v998
    %v1013 = vunpack.c.l.b16 %v999
    %v1014 = vunpack.c.l.b16 %v1000
    %v1015 = vunpack.c.l.b16 %v1001
    %v1016 = vunpack.c.l.b16 %v1002
    %v1017 = vpack.c.b16 %v1011, %v1010
    %v1018 = vpack.c.b16 %v1013, %v1012
    %v1019 = vpack.c.b16 %v1015, %v1014
    %v1020 = vpack.c.b16 %v1016, %v1016
    %vm1024 = vcmask 457728
    %v1026 = vsel %vm1024, %v995, 0
    %vm1028 = vcmask 1043456
    %v1030 = vsel %vm1028, %v1020, 0
    %1032 = vmatpush.bf16.msra.mxu0 0
    %1033 = vmatpush.bf16.msra.mxu0 0
    %1034 = vmatpush.bf16.msra.mxu0 0
    %1035 = vmatpush.bf16.msra.mxu0 0
    %1036 = vmatpush.bf16.msra.mxu0 %v1030
    %1037 = vmatpush.bf16.msra.mxu0 %v1019
    %1038 = vmatpush.bf16.msra.mxu0 %v1018
    %1039 = vmatpush.bf16.msra.mxu0 %v1017
    %1040 = vmatmul.bf16.gmra.mxu0 %v1026
    %v1041 = vpop.f32.mrf.mxu0
    %v1042 = vadd.f32 0.0, %v1041
    %v1043 = vpop.f32.mrf.mxu0
    %1044 = vdwg.mxu0
    %v1045 = vld [vmem:[%s10] sm:$0x3]
    %v1046 = vrot.slane %v1042, 4
    %v1047 = vadd.f32 %v1042, %v1046
    %v1048 = vrot.slane %v1047, 2
    %v1049 = vadd.f32 %v1047, %v1048
    %v1050 = vrot.slane %v1049, 1
    %v1051 = vadd.f32 %v1049, %v1050
    %v1052 = vmul.f32 %v1051, %v389
    %v1053 = vsub.f32 %v1042, %v1052
    %v1054 = vmul.f32 %v1053, %v1053
    %v1055 = vrot.slane %v1054, 4
    %v1056 = vadd.f32 %v1054, %v1055
    %v1057 = vrot.slane %v1056, 2
    %v1058 = vadd.f32 %v1056, %v1057
    %v1059 = vrot.slane %v1058, 1
    %v1060 = vadd.f32 %v1058, %v1059
    %v1061 = vmul.f32 %v1060, %v389
    %v1062 = vadd.f32 %v1061, 1e-05
    %v1063 = vrsqrt.pop %v1062
    %v1064 = vmul.f32 %v1063, %v1062
    %v1065 = vmul.f32 %v1064, %v1063
    %v1066 = vmul.f32 0.5, %v1065
    %v1067 = vsub.f32 1.5, %v1066
    %v1068 = vmul.f32 %v1063, %v1067
    %vm1069 = vweird.f32 %v1062
    %vm1070 = vweird.f32 %v1063
    %vm1071 = vmor %vm1069, %vm1070
    %v1072 = vsel %vm1071, %v1063, %v1068
    %v1073 = vmul.f32 %v1045, %v1072
    %v1074 = vperm.slane %v1073, 0
    %v1075 = vmul.f32 %v1053, %v1074
    %v1076 = vperm.slane %v1045, 1
    %v1077 = vadd.f32 %v1075, %v1076
    %vm1078 = vcmp.ge.f32.partialorder %v1077, 0.0
    %v1079 = vstv %s994
    %v1080 = vmul.f32 %v1079, %v1077
    %v1081 = vsel %vm1078, %v1077, %v1080
    %s1082 = sld [smem:[#allocation2 + $0x4]]
    %v1083 = vpack.c.bf16 %v1081, %v1081
    %v1084 = vld [vmem:[%s11] sm:$0xf]
    %v1085 = vld [vmem:[%s11 + $0x4] sm:$0xf]
    %v1086 = vld [vmem:[%s11 + $0x8] sm:$0xf]
    %v1087 = vld [vmem:[%s11 + $0xc] sm:$0xf]
    %v1088 = vld [vmem:[%s11 + $0x10] sm:$0xf]
    %v1089 = vld [vmem:[%s11 + $0x14] sm:$0xf]
    %v1090 = vld [vmem:[%s11 + $0x18] sm:$0xf]
    %v1091 = vld [vmem:[%s11 + $0x1c] sm:$0xf]
    %v1092 = vld [vmem:[%s11 + $0x20] sm:$0xf]
    %v1093 = vld [vmem:[%s11 + $0x24] sm:$0xf]
    %v1094 = vld [vmem:[%s11 + $0x28] sm:$0xf]
    %v1095 = vld [vmem:[%s11 + $0x2c] sm:$0xf]
    %v1096 = vld [vmem:[%s11 + $0x30] sm:$0xf]
    %v1097 = vld [vmem:[%s11 + $0x34] sm:$0xf]
    %v1098 = vld [vmem:[%s11 + $0x38] sm:$0xf]
    %v1099 = vld [vmem:[%s11 + $0x3c] sm:$0xf]
    %v1116 = vunpack.c.l.b16 %v1084
    %v1117 = vunpack.c.l.b16 %v1085
    %v1118 = vunpack.c.l.b16 %v1086
    %v1119 = vunpack.c.l.b16 %v1087
    %v1120 = vunpack.c.l.b16 %v1088
    %v1121 = vunpack.c.l.b16 %v1089
    %v1122 = vunpack.c.l.b16 %v1090
    %v1123 = vunpack.c.l.b16 %v1091
    %v1124 = vunpack.c.l.b16 %v1092
    %v1125 = vunpack.c.l.b16 %v1093
    %v1126 = vunpack.c.l.b16 %v1094
    %v1127 = vunpack.c.l.b16 %v1095
    %v1128 = vunpack.c.l.b16 %v1096
    %v1129 = vunpack.c.l.b16 %v1097
    %v1130 = vunpack.c.l.b16 %v1098
    %v1131 = vunpack.c.l.b16 %v1099
    %v1132 = vpack.c.b16 %v1117, %v1116
    %v1133 = vpack.c.b16 %v1119, %v1118
    %v1134 = vpack.c.b16 %v1121, %v1120
    %v1135 = vpack.c.b16 %v1123, %v1122
    %v1136 = vpack.c.b16 %v1125, %v1124
    %v1137 = vpack.c.b16 %v1127, %v1126
    %v1138 = vpack.c.b16 %v1129, %v1128
    %v1139 = vpack.c.b16 %v1131, %v1130
    %1148 = vmatpush.bf16.msra.mxu0 %v1139
    %1149 = vmatpush.bf16.msra.mxu0 %v1138
    %1150 = vmatpush.bf16.msra.mxu0 %v1137
    %1151 = vmatpush.bf16.msra.mxu0 %v1136
    %1152 = vmatpush.bf16.msra.mxu0 %v1135
    %1153 = vmatpush.bf16.msra.mxu0 %v1134
    %1154 = vmatpush.bf16.msra.mxu0 %v1133
    %1155 = vmatpush.bf16.msra.mxu0 %v1132
    %1156 = vmatmul.bf16.gmra.mxu0 %v1083
    %v1157 = vpop.f32.mrf.mxu0
    %v1158 = vadd.f32 0.0, %v1157
    %v1159 = vpop.f32.mrf.mxu0
    %1160 = vdwg.mxu0
    %v1161 = vld [vmem:[%s12] sm:$0x3]
    %v1162 = vrot.slane %v1158, 4
    %v1163 = vadd.f32 %v1158, %v1162
    %v1164 = vrot.slane %v1163, 2
    %v1165 = vadd.f32 %v1163, %v1164
    %v1166 = vrot.slane %v1165, 1
    %v1167 = vadd.f32 %v1165, %v1166
    %v1168 = vmul.f32 %v1167, %v389
    %v1169 = vsub.f32 %v1158, %v1168
    %v1170 = vmul.f32 %v1169, %v1169
    %v1171 = vrot.slane %v1170, 4
    %v1172 = vadd.f32 %v1170, %v1171
    %v1173 = vrot.slane %v1172, 2
    %v1174 = vadd.f32 %v1172, %v1173
    %v1175 = vrot.slane %v1174, 1
    %v1176 = vadd.f32 %v1174, %v1175
    %v1177 = vmul.f32 %v1176, %v389
    %v1178 = vadd.f32 %v1177, 1e-05
    %v1179 = vrsqrt.pop %v1178
    %v1180 = vmul.f32 %v1179, %v1178
    %v1181 = vmul.f32 %v1180, %v1179
    %v1182 = vmul.f32 0.5, %v1181
    %v1183 = vsub.f32 1.5, %v1182
    %v1184 = vmul.f32 %v1179, %v1183
    %vm1185 = vweird.f32 %v1178
    %vm1186 = vweird.f32 %v1179
    %vm1187 = vmor %vm1185, %vm1186
    %v1188 = vsel %vm1187, %v1179, %v1184
    %v1189 = vmul.f32 %v1161, %v1188
    %v1190 = vperm.slane %v1189, 0
    %v1191 = vmul.f32 %v1169, %v1190
    %v1192 = vperm.slane %v1161, 1
    %v1193 = vadd.f32 %v1191, %v1192
    %vm1194 = vcmp.ge.f32.partialorder %v1193, 0.0
    %v1195 = vstv %s1082
    %v1196 = vmul.f32 %v1195, %v1193
    %v1197 = vsel %vm1194, %v1193, %v1196
    %s1198 = sld [smem:[#allocation2 + $0x5]]
    %v1199 = vpack.c.bf16 %v1197, %v1197
    %v1200 = vld [vmem:[%s13] sm:$0xf]
    %v1201 = vld [vmem:[%s13 + $0x4] sm:$0xf]
    %v1202 = vld [vmem:[%s13 + $0x8] sm:$0xf]
    %v1203 = vld [vmem:[%s13 + $0xc] sm:$0xf]
    %v1204 = vld [vmem:[%s13 + $0x10] sm:$0xf]
    %v1205 = vld [vmem:[%s13 + $0x14] sm:$0xf]
    %v1206 = vld [vmem:[%s13 + $0x18] sm:$0xf]
    %v1207 = vld [vmem:[%s13 + $0x1c] sm:$0xf]
    %v1208 = vld [vmem:[%s13 + $0x20] sm:$0xf]
    %v1209 = vld [vmem:[%s13 + $0x24] sm:$0xf]
    %v1210 = vld [vmem:[%s13 + $0x28] sm:$0xf]
    %v1211 = vld [vmem:[%s13 + $0x2c] sm:$0xf]
    %v1212 = vld [vmem:[%s13 + $0x30] sm:$0xf]
    %v1213 = vld [vmem:[%s13 + $0x34] sm:$0xf]
    %v1214 = vld [vmem:[%s13 + $0x38] sm:$0xf]
    %v1215 = vld [vmem:[%s13 + $0x3c] sm:$0xf]
    %v1232 = vunpack.c.l.b16 %v1200
    %v1233 = vunpack.c.l.b16 %v1201
    %v1234 = vunpack.c.l.b16 %v1202
    %v1235 = vunpack.c.l.b16 %v1203
    %v1236 = vunpack.c.l.b16 %v1204
    %v1237 = vunpack.c.l.b16 %v1205
    %v1238 = vunpack.c.l.b16 %v1206
    %v1239 = vunpack.c.l.b16 %v1207
    %v1240 = vunpack.c.l.b16 %v1208
    %v1241 = vunpack.c.l.b16 %v1209
    %v1242 = vunpack.c.l.b16 %v1210
    %v1243 = vunpack.c.l.b16 %v1211
    %v1244 = vunpack.c.l.b16 %v1212
    %v1245 = vunpack.c.l.b16 %v1213
    %v1246 = vunpack.c.l.b16 %v1214
    %v1247 = vunpack.c.l.b16 %v1215
    %v1248 = vpack.c.b16 %v1233, %v1232
    %v1249 = vpack.c.b16 %v1235, %v1234
    %v1250 = vpack.c.b16 %v1237, %v1236
    %v1251 = vpack.c.b16 %v1239, %v1238
    %v1252 = vpack.c.b16 %v1241, %v1240
    %v1253 = vpack.c.b16 %v1243, %v1242
    %v1254 = vpack.c.b16 %v1245, %v1244
    %v1255 = vpack.c.b16 %v1247, %v1246
    %1264 = vmatpush.bf16.msra.mxu0 %v1255
    %1265 = vmatpush.bf16.msra.mxu0 %v1254
    %1266 = vmatpush.bf16.msra.mxu0 %v1253
    %1267 = vmatpush.bf16.msra.mxu0 %v1252
    %1268 = vmatpush.bf16.msra.mxu0 %v1251
    %1269 = vmatpush.bf16.msra.mxu0 %v1250
    %1270 = vmatpush.bf16.msra.mxu0 %v1249
    %1271 = vmatpush.bf16.msra.mxu0 %v1248
    %1272 = vmatmul.bf16.gmra.mxu0 %v1199
    %v1273 = vpop.f32.mrf.mxu0
    %v1274 = vadd.f32 0.0, %v1273
    %v1275 = vpop.f32.mrf.mxu0
    %1276 = vdwg.mxu0
    %v1277 = vld [vmem:[%s14] sm:$0x3]
    %v1278 = vsel %vm955, %v1274, 0.0
    %v1279 = vrot.slane %v1278, 4
    %v1280 = vadd.f32 %v1278, %v1279
    %v1281 = vrot.slane %v1280, 2
    %v1282 = vadd.f32 %v1280, %v1281
    %v1283 = vrot.slane %v1282, 1
    %v1284 = vadd.f32 %v1282, %v1283
    %v1285 = vmul.f32 %v1284, %v389
    %v1286 = vsub.f32 %v1274, %v1285
    %v1287 = vmul.f32 %v1286, %v1286
    %v1288 = vsel %vm955, %v1287, 0.0
    %v1289 = vrot.slane %v1288, 4
    %v1290 = vadd.f32 %v1288, %v1289
    %v1291 = vrot.slane %v1290, 2
    %v1292 = vadd.f32 %v1290, %v1291
    %v1293 = vrot.slane %v1292, 1
    %v1294 = vadd.f32 %v1292, %v1293
    %v1295 = vmul.f32 %v1294, %v389
    %v1296 = vadd.f32 %v1295, 1e-05
    %v1297 = vrsqrt.pop %v1296
    %v1298 = vmul.f32 %v1297, %v1296
    %v1299 = vmul.f32 %v1298, %v1297
    %v1300 = vmul.f32 0.5, %v1299
    %v1301 = vsub.f32 1.5, %v1300
    %v1302 = vmul.f32 %v1297, %v1301
    %vm1303 = vweird.f32 %v1296
    %vm1304 = vweird.f32 %v1297
    %vm1305 = vmor %vm1303, %vm1304
    %v1306 = vsel %vm1305, %v1297, %v1302
    %v1307 = vmul.f32 %v1277, %v1306
    %v1308 = vperm.slane %v1307, 0
    %v1309 = vmul.f32 %v1286, %v1308
    %v1310 = vperm.slane %v1277, 1
    %v1311 = vadd.f32 %v1309, %v1310
    %vm1312 = vcmp.ge.f32.partialorder %v1311, 0.0
    %v1313 = vstv %s1198
    %v1314 = vmul.f32 %v1313, %v1311
    %v1315 = vsel %vm1312, %v1311, %v1314
    %v1316 = vpack.c.bf16 %v993, %v993
    %v1317 = vld [vmem:[%s15] sm:$0xf]
    %v1318 = vld [vmem:[%s15 + $0x4] sm:$0xf]
    %v1319 = vld [vmem:[%s15 + $0x8] sm:$0xf]
    %v1320 = vld [vmem:[%s15 + $0xc] sm:$0xf]
    %v1321 = vld [vmem:[%s15 + $0x10] sm:$0xf]
    %v1322 = vld [vmem:[%s15 + $0x14] sm:$0xf]
    %v1323 = vld [vmem:[%s15 + $0x18] sm:$0xf]
    %v1324 = vld [vmem:[%s15 + $0x1c] sm:$0xf]
    %v1325 = vpack.c.bf16 %v1315, %v1315
    %v1326 = vld [vmem:[%s16] sm:$0xf]
    %v1327 = vld [vmem:[%s16 + $0x4] sm:$0xf]
    %v1328 = vld [vmem:[%s16 + $0x8] sm:$0xf]
    %v1329 = vld [vmem:[%s16 + $0xc] sm:$0xf]
    %v1330 = vld [vmem:[%s16 + $0x10] sm:$0xf]
    %v1331 = vld [vmem:[%s16 + $0x14] sm:$0xf]
    %v1332 = vld [vmem:[%s16 + $0x18] sm:$0xf]
    %v1333 = vld [vmem:[%s16 + $0x1c] sm:$0xf]
    %v1342 = vunpack.c.l.b16 %v1326
    %v1343 = vunpack.c.l.b16 %v1327
    %v1344 = vunpack.c.l.b16 %v1328
    %v1345 = vunpack.c.l.b16 %v1329
    %v1346 = vunpack.c.l.b16 %v1330
    %v1347 = vunpack.c.l.b16 %v1331
    %v1348 = vunpack.c.l.b16 %v1332
    %v1349 = vunpack.c.l.b16 %v1333
    %v1350 = vpack.c.b16 %v1343, %v1342
    %v1351 = vpack.c.b16 %v1345, %v1344
    %v1352 = vpack.c.b16 %v1347, %v1346
    %v1353 = vpack.c.b16 %v1349, %v1348
    %v1359 = vsel %vm955, %v1325, 0
    %1361 = vmatpush.bf16.msra.mxu0 0
    %1362 = vmatpush.bf16.msra.mxu0 0
    %1363 = vmatpush.bf16.msra.mxu0 0
    %1364 = vmatpush.bf16.msra.mxu0 0
    %1365 = vmatpush.bf16.msra.mxu0 %v1353
    %1366 = vmatpush.bf16.msra.mxu0 %v1352
    %1367 = vmatpush.bf16.msra.mxu0 %v1351
    %1368 = vmatpush.bf16.msra.mxu0 %v1350
    %1369 = vmatmul.bf16.gmra.mxu0 %v1359
    %v1370 = vpop.f32.mrf.mxu0
    %v1371 = vadd.f32 0.0, %v1370
    %v1372 = vpop.f32.mrf.mxu0
    %1373 = vdwg.mxu0
    %v1382 = vunpack.c.l.b16 %v1317
    %v1383 = vunpack.c.l.b16 %v1318
    %v1384 = vunpack.c.l.b16 %v1319
    %v1385 = vunpack.c.l.b16 %v1320
    %v1386 = vunpack.c.l.b16 %v1321
    %v1387 = vunpack.c.l.b16 %v1322
    %v1388 = vunpack.c.l.b16 %v1323
    %v1389 = vunpack.c.l.b16 %v1324
    %v1390 = vpack.c.b16 %v1383, %v1382
    %v1391 = vpack.c.b16 %v1385, %v1384
    %v1392 = vpack.c.b16 %v1387, %v1386
    %v1393 = vpack.c.b16 %v1389, %v1388
    %v1399 = vsel %vm955, %v1316, 0
    %1401 = vmatpush.bf16.msra.mxu0 0
    %1402 = vmatpush.bf16.msra.mxu0 0
    %1403 = vmatpush.bf16.msra.mxu0 0
    %1404 = vmatpush.bf16.msra.mxu0 0
    %1405 = vmatpush.bf16.msra.mxu0 %v1393
    %1406 = vmatpush.bf16.msra.mxu0 %v1392
    %1407 = vmatpush.bf16.msra.mxu0 %v1391
    %1408 = vmatpush.bf16.msra.mxu0 %v1390
    %1409 = vmatmul.bf16.gmra.mxu0 %v1399
    %v1410 = vpop.f32.mrf.mxu0
    %v1411 = vadd.f32 %v1371, %v1410
    %v1412 = vpop.f32.mrf.mxu0
    %1413 = vdwg.mxu0
    %v1414 = vld [vmem:[%s17] sm:$0x3]
    %s1415 = sld [smem:[#allocation2 + $0x6]]
    %v1416 = vrot.slane %v1411, 4
    %v1417 = vadd.f32 %v1411, %v1416
    %v1418 = vrot.slane %v1417, 2
    %v1419 = vadd.f32 %v1417, %v1418
    %v1420 = vrot.slane %v1419, 1
    %v1421 = vadd.f32 %v1419, %v1420
    %v1422 = vmul.f32 %v1421, %v389
    %v1423 = vsub.f32 %v1411, %v1422
    %v1424 = vmul.f32 %v1423, %v1423
    %v1425 = vrot.slane %v1424, 4
    %v1426 = vadd.f32 %v1424, %v1425
    %v1427 = vrot.slane %v1426, 2
    %v1428 = vadd.f32 %v1426, %v1427
    %v1429 = vrot.slane %v1428, 1
    %v1430 = vadd.f32 %v1428, %v1429
    %v1431 = vmul.f32 %v1430, %v389
    %v1432 = vadd.f32 %v1431, 1e-05
    %v1433 = vrsqrt.pop %v1432
    %v1434 = vmul.f32 %v1433, %v1432
    %v1435 = vmul.f32 %v1434, %v1433
    %v1436 = vmul.f32 0.5, %v1435
    %v1437 = vsub.f32 1.5, %v1436
    %v1438 = vmul.f32 %v1433, %v1437
    %vm1439 = vweird.f32 %v1432
    %vm1440 = vweird.f32 %v1433
    %vm1441 = vmor %vm1439, %vm1440
    %v1442 = vsel %vm1441, %v1433, %v1438
    %v1443 = vmul.f32 %v1414, %v1442
    %v1444 = vperm.slane %v1443, 0
    %v1445 = vmul.f32 %v1423, %v1444
    %v1446 = vperm.slane %v1414, 1
    %v1447 = vadd.f32 %v1445, %v1446
    %vm1448 = vcmp.ge.f32.partialorder %v1447, 0.0
    %v1449 = vstv %s1415
    %v1450 = vmul.f32 %v1449, %v1447
    %v1451 = vsel %vm1448, %v1447, %v1450
    %s1452 = sld [smem:[#allocation2 + $0x7]]
    %v1453 = vpack.c.bf16 %v1451, %v1451
    %v1454 = vld [vmem:[%s18] sm:$0xf]
    %v1455 = vld [vmem:[%s18 + $0x4] sm:$0xf]
    %v1456 = vld [vmem:[%s18 + $0x8] sm:$0xf]
    %v1457 = vld [vmem:[%s18 + $0xc] sm:$0xf]
    %v1458 = vld [vmem:[%s18 + $0x10] sm:$0xf]
    %v1459 = vld [vmem:[%s18 + $0x14] sm:$0xf]
    %v1460 = vld [vmem:[%s18 + $0x18] sm:$0xf]
    %v1461 = vld [vmem:[%s18 + $0x1c] sm:$0xf]
    %v1462 = vld [vmem:[%s18 + $0x20] sm:$0xf]
    %v1463 = vld [vmem:[%s18 + $0x24] sm:$0xf]
    %v1464 = vld [vmem:[%s18 + $0x28] sm:$0xf]
    %v1465 = vld [vmem:[%s18 + $0x2c] sm:$0xf]
    %v1466 = vld [vmem:[%s18 + $0x30] sm:$0xf]
    %v1467 = vld [vmem:[%s18 + $0x34] sm:$0xf]
    %v1468 = vld [vmem:[%s18 + $0x38] sm:$0xf]
    %v1469 = vld [vmem:[%s18 + $0x3c] sm:$0xf]
    %v1486 = vunpack.c.l.b16 %v1454
    %v1487 = vunpack.c.l.b16 %v1455
    %v1488 = vunpack.c.l.b16 %v1456
    %v1489 = vunpack.c.l.b16 %v1457
    %v1490 = vunpack.c.l.b16 %v1458
    %v1491 = vunpack.c.l.b16 %v1459
    %v1492 = vunpack.c.l.b16 %v1460
    %v1493 = vunpack.c.l.b16 %v1461
    %v1494 = vunpack.c.l.b16 %v1462
    %v1495 = vunpack.c.l.b16 %v1463
    %v1496 = vunpack.c.l.b16 %v1464
    %v1497 = vunpack.c.l.b16 %v1465
    %v1498 = vunpack.c.l.b16 %v1466
    %v1499 = vunpack.c.l.b16 %v1467
    %v1500 = vunpack.c.l.b16 %v1468
    %v1501 = vunpack.c.l.b16 %v1469
    %v1502 = vpack.c.b16 %v1487, %v1486
    %v1503 = vpack.c.b16 %v1489, %v1488
    %v1504 = vpack.c.b16 %v1491, %v1490
    %v1505 = vpack.c.b16 %v1493, %v1492
    %v1506 = vpack.c.b16 %v1495, %v1494
    %v1507 = vpack.c.b16 %v1497, %v1496
    %v1508 = vpack.c.b16 %v1499, %v1498
    %v1509 = vpack.c.b16 %v1501, %v1500
    %1518 = vmatpush.bf16.msra.mxu0 %v1509
    %1519 = vmatpush.bf16.msra.mxu0 %v1508
    %1520 = vmatpush.bf16.msra.mxu0 %v1507
    %1521 = vmatpush.bf16.msra.mxu0 %v1506
    %1522 = vmatpush.bf16.msra.mxu0 %v1505
    %1523 = vmatpush.bf16.msra.mxu0 %v1504
    %1524 = vmatpush.bf16.msra.mxu0 %v1503
    %1525 = vmatpush.bf16.msra.mxu0 %v1502
    %1526 = vmatmul.bf16.gmra.mxu0 %v1453
    %v1527 = vpop.f32.mrf.mxu0
    %v1528 = vadd.f32 0.0, %v1527
    %v1529 = vpop.f32.mrf.mxu0
    %1530 = vdwg.mxu0
    %v1531 = vld [vmem:[%s19] sm:$0x3]
    %v1532 = vrot.slane %v1528, 4
    %v1533 = vadd.f32 %v1528, %v1532
    %v1534 = vrot.slane %v1533, 2
    %v1535 = vadd.f32 %v1533, %v1534
    %v1536 = vrot.slane %v1535, 1
    %v1537 = vadd.f32 %v1535, %v1536
    %v1538 = vmul.f32 %v1537, %v389
    %v1539 = vsub.f32 %v1528, %v1538
    %v1540 = vmul.f32 %v1539, %v1539
    %v1541 = vrot.slane %v1540, 4
    %v1542 = vadd.f32 %v1540, %v1541
    %v1543 = vrot.slane %v1542, 2
    %v1544 = vadd.f32 %v1542, %v1543
    %v1545 = vrot.slane %v1544, 1
    %v1546 = vadd.f32 %v1544, %v1545
    %v1547 = vmul.f32 %v1546, %v389
    %v1548 = vadd.f32 %v1547, 1e-05
    %v1549 = vrsqrt.pop %v1548
    %v1550 = vmul.f32 %v1549, %v1548
    %v1551 = vmul.f32 %v1550, %v1549
    %v1552 = vmul.f32 0.5, %v1551
    %v1553 = vsub.f32 1.5, %v1552
    %v1554 = vmul.f32 %v1549, %v1553
    %vm1555 = vweird.f32 %v1548
    %vm1556 = vweird.f32 %v1549
    %vm1557 = vmor %vm1555, %vm1556
    %v1558 = vsel %vm1557, %v1549, %v1554
    %v1559 = vmul.f32 %v1531, %v1558
    %v1560 = vperm.slane %v1559, 0
    %v1561 = vmul.f32 %v1539, %v1560
    %v1562 = vperm.slane %v1531, 1
    %v1563 = vadd.f32 %v1561, %v1562
    %vm1564 = vcmp.ge.f32.partialorder %v1563, 0.0
    %v1565 = vstv %s1452
    %v1566 = vmul.f32 %v1565, %v1563
    %v1567 = vsel %vm1564, %v1563, %v1566
    %s1568 = sld [smem:[#allocation2 + $0x8]]
    %v1569 = vpack.c.bf16 %v1567, %v1567
    %v1570 = vld [vmem:[%s20] sm:$0xf]
    %v1571 = vld [vmem:[%s20 + $0x4] sm:$0xf]
    %v1572 = vld [vmem:[%s20 + $0x8] sm:$0xf]
    %v1573 = vld [vmem:[%s20 + $0xc] sm:$0xf]
    %v1574 = vld [vmem:[%s20 + $0x10] sm:$0xf]
    %v1575 = vld [vmem:[%s20 + $0x14] sm:$0xf]
    %v1576 = vld [vmem:[%s20 + $0x18] sm:$0xf]
    %v1577 = vld [vmem:[%s20 + $0x1c] sm:$0xf]
    %v1578 = vld [vmem:[%s20 + $0x20] sm:$0xf]
    %v1579 = vld [vmem:[%s20 + $0x24] sm:$0xf]
    %v1580 = vld [vmem:[%s20 + $0x28] sm:$0xf]
    %v1581 = vld [vmem:[%s20 + $0x2c] sm:$0xf]
    %v1582 = vld [vmem:[%s20 + $0x30] sm:$0xf]
    %v1583 = vld [vmem:[%s20 + $0x34] sm:$0xf]
    %v1584 = vld [vmem:[%s20 + $0x38] sm:$0xf]
    %v1585 = vld [vmem:[%s20 + $0x3c] sm:$0xf]
    %v1602 = vunpack.c.l.b16 %v1570
    %v1603 = vunpack.c.l.b16 %v1571
    %v1604 = vunpack.c.l.b16 %v1572
    %v1605 = vunpack.c.l.b16 %v1573
    %v1606 = vunpack.c.l.b16 %v1574
    %v1607 = vunpack.c.l.b16 %v1575
    %v1608 = vunpack.c.l.b16 %v1576
    %v1609 = vunpack.c.l.b16 %v1577
    %v1610 = vunpack.c.l.b16 %v1578
    %v1611 = vunpack.c.l.b16 %v1579
    %v1612 = vunpack.c.l.b16 %v1580
    %v1613 = vunpack.c.l.b16 %v1581
    %v1614 = vunpack.c.l.b16 %v1582
    %v1615 = vunpack.c.l.b16 %v1583
    %v1616 = vunpack.c.l.b16 %v1584
    %v1617 = vunpack.c.l.b16 %v1585
    %v1618 = vpack.c.b16 %v1603, %v1602
    %v1619 = vpack.c.b16 %v1605, %v1604
    %v1620 = vpack.c.b16 %v1607, %v1606
    %v1621 = vpack.c.b16 %v1609, %v1608
    %v1622 = vpack.c.b16 %v1611, %v1610
    %v1623 = vpack.c.b16 %v1613, %v1612
    %v1624 = vpack.c.b16 %v1615, %v1614
    %v1625 = vpack.c.b16 %v1617, %v1616
    %1634 = vmatpush.bf16.msra.mxu0 %v1625
    %1635 = vmatpush.bf16.msra.mxu0 %v1624
    %1636 = vmatpush.bf16.msra.mxu0 %v1623
    %1637 = vmatpush.bf16.msra.mxu0 %v1622
    %1638 = vmatpush.bf16.msra.mxu0 %v1621
    %1639 = vmatpush.bf16.msra.mxu0 %v1620
    %1640 = vmatpush.bf16.msra.mxu0 %v1619
    %1641 = vmatpush.bf16.msra.mxu0 %v1618
    %1642 = vmatmul.bf16.gmra.mxu0 %v1569
    %v1643 = vpop.f32.mrf.mxu0
    %v1644 = vadd.f32 0.0, %v1643
    %v1645 = vpop.f32.mrf.mxu0
    %1646 = vdwg.mxu0
    %v1647 = vld [vmem:[%s21] sm:$0x3]
    %v1648 = vsel %vm955, %v1644, 0.0
    %v1649 = vrot.slane %v1648, 4
    %v1650 = vadd.f32 %v1648, %v1649
    %v1651 = vrot.slane %v1650, 2
    %v1652 = vadd.f32 %v1650, %v1651
    %v1653 = vrot.slane %v1652, 1
    %v1654 = vadd.f32 %v1652, %v1653
    %v1655 = vmul.f32 %v1654, %v389
    %v1656 = vsub.f32 %v1644, %v1655
    %v1657 = vmul.f32 %v1656, %v1656
    %v1658 = vsel %vm955, %v1657, 0.0
    %v1659 = vrot.slane %v1658, 4
    %v1660 = vadd.f32 %v1658, %v1659
    %v1661 = vrot.slane %v1660, 2
    %v1662 = vadd.f32 %v1660, %v1661
    %v1663 = vrot.slane %v1662, 1
    %v1664 = vadd.f32 %v1662, %v1663
    %v1665 = vmul.f32 %v1664, %v389
    %v1666 = vadd.f32 %v1665, 1e-05
    %v1667 = vrsqrt.pop %v1666
    %v1668 = vmul.f32 %v1667, %v1666
    %v1669 = vmul.f32 %v1668, %v1667
    %v1670 = vmul.f32 0.5, %v1669
    %v1671 = vsub.f32 1.5, %v1670
    %v1672 = vmul.f32 %v1667, %v1671
    %vm1673 = vweird.f32 %v1666
    %vm1674 = vweird.f32 %v1667
    %vm1675 = vmor %vm1673, %vm1674
    %v1676 = vsel %vm1675, %v1667, %v1672
    %v1677 = vmul.f32 %v1647, %v1676
    %v1678 = vperm.slane %v1677, 0
    %v1679 = vmul.f32 %v1656, %v1678
    %v1680 = vperm.slane %v1647, 1
    %v1681 = vadd.f32 %v1679, %v1680
    %vm1682 = vcmp.ge.f32.partialorder %v1681, 0.0
    %v1683 = vstv %s1568
    %v1684 = vmul.f32 %v1683, %v1681
    %v1685 = vsel %vm1682, %v1681, %v1684
    %v1686 = vld [vmem:[%s22] sm:$0x1]
    %v1688 = vperm.slane %v1686, 0
    %v1690 = vmul.f32 %v1685, %v1688
    %v1691 = vsel %vm955, %v1690, 0.0
    %1692 = vadd.xlane.f32.xlu0 %v1691
    %v1693 = vpop.xlane.xlu0 %1692
    %s1694 = sld [smem:[#allocation2 + $0x9]]
    %v1695 = vstv %s1694
    %v1696 = vadd.f32 %v1693, %v1695
    %vm1697 = vcmask 7168
    %1698 = vst.msk [vmem:[%s23] sm:$0xff] %vm1697, %v1696
    // Predicated region
    $region106: #{tpu_custom_call.1} parent=1 // pred_check
      _
    $region107: #{tpu_custom_call.1} parent=1 // pred_check_branch
      %1700 = sbr.rel (0) target = $region109
    $region108: #{tpu_custom_call.1} parent=1 // pred_region
      _
    $region109: #{tpu_custom_call.1} parent=1 // pred_fallthru
      _
    // Predicated region
    $region110: #{tpu_custom_call.1} parent=1 // pred_check
      _
    $region111: #{tpu_custom_call.1} parent=1 // pred_check_branch
      %1702 = sbr.rel (0) target = $region113
    $region112: #{tpu_custom_call.1} parent=1 // pred_region
      _
    $region113: #{tpu_custom_call.1} parent=1 // pred_fallthru
      _
    %1703 = vsyncpa [#allocation3], 1
    %1704 = vsyncpa [#allocation7], 1
    %1705 = vsyncpa [#allocation4], 1

</llo_original>
